<compile_context>
chip_gen: v7x
topology: tpu7x:2x2x1
jax: 0.10.0
libtpu: 0.0.40
codegen_flags: <defaults>
</compile_context>

<pallas_src>
import functools
import math

import numpy as np
import jax
import jax.numpy as jnp
from jax.experimental import pallas as pl
from jax.experimental.pallas import tpu as pltpu


def _round_up(x: int, m: int) -> int:
    return ((x + m - 1) // m) * m


def _spec_power_kernel(frames_ref, basis_ref, p_ref, stats_ref, *,
                       n_freq, n_freq_pad, n_freq8, n_frames, tf, precision):
    """One (batch row, frame tile) grid step.

    frames_ref: (1, tf, n_fft_pad)           frame rows (zero in padded frames / fft cols)
    basis_ref : (n_fft_pad, 2*n_freq_pad)    [window*cos | -window*sin] * scale (padded cols = 0)
    p_ref     : (1, n_freq8, tf)             power tile, already transposed (freq on sublanes,
                                             frames on lanes -> lane-dense stores)
    stats_ref : (8, 128)                     per-tile partials: row0=sum, row1=sumsq,
                                             row2=min, row3=max (broadcast across lanes)
    """
    f = frames_ref[0]                                     # (tf, n_fft_pad)
    # Single fused MXU matmul: real + imaginary DFT in one push (N dim padded to 128 multiple).
    z = jnp.dot(f, basis_ref[...], precision=precision,
                preferred_element_type=jnp.float32)       # (tf, 2*n_freq_pad) f32
    re = z[:, :n_freq_pad]
    im = z[:, n_freq_pad:]
    p = re * re + im * im                                 # power = 2.0, f32 epilogue

    # Partial stats. Padded frame rows and padded frequency columns of `p` are exactly 0
    # (zero frame rows / zero basis columns), and power >= 0, so sum / sumsq / max need no
    # masking; only `min` must exclude the zero padding.
    part_sum = jnp.sum(p)
    part_ssq = jnp.sum(p * p)
    part_max = jnp.max(p)
    frame_i = jax.lax.broadcasted_iota(jnp.int32, p.shape, 0) + pl.program_id(1) * tf
    col_i = jax.lax.broadcasted_iota(jnp.int32, p.shape, 1)
    valid = (frame_i < n_frames) & (col_i < n_freq)
    part_min = jnp.min(jnp.where(valid, p, jnp.inf))

    # Transposed write: freq -> sublanes (pad only to a multiple of 8), frames -> lanes.
    # The XLU transpose hides under the MXU matmul.
    p_t = jnp.transpose(p)                                # (n_freq_pad, tf)
    p_ref[0] = p_t[:n_freq8, :]

    ridx = jax.lax.broadcasted_iota(jnp.int32, (8, 128), 0)
    stats_ref[...] = jnp.where(
        ridx == 0, part_sum,
        jnp.where(ridx == 1, part_ssq,
                  jnp.where(ridx == 2, part_min,
                            jnp.where(ridx == 3, part_max, 0.0)))).astype(jnp.float32)


class Spectrogram:
    """JAX/Pallas port of birdclef.signal.Spectrogram.

    Matches torchaudio defaults: hann window (periodic), power=2.0, center=True,
    pad_mode='reflect', onesided=True, normalized -> divide power by sum(window^2),
    followed by the module's global mean/std + min/max normalization.
    """

    def __init__(self, sample_rate: int = 32000, n_fft: int = 1024,
                 win_length: int = 1024, hop_length: int = 320,
                 normalized: bool = True,
                 matmul_dtype=jnp.bfloat16,   # MXU-native on v5e/v6e/v7x; use f32 for tight accuracy
                 frame_tile: int = 512):
        self.sample_rate = sample_rate
        self.n_fft = n_fft
        self.win_length = win_length
        self.hop_length = hop_length
        self.normalized = normalized
        self.matmul_dtype = np.dtype(matmul_dtype)
        self.frame_tile = frame_tile

        self.n_freq = n_fft // 2 + 1
        self.n_freq_pad = _round_up(self.n_freq, 128)   # lane-dense MXU output (513 -> 640)
        self.n_freq8 = _round_up(self.n_freq, 8)        # sublane-padded output rows (513 -> 520)
        self.n_fft_pad = _round_up(n_fft, 128)

        # f32 matmuls need explicit HIGHEST precision on the MXU to keep ~f32 accuracy;
        # bf16 inputs are native -> DEFAULT.
        self.mm_precision = (jax.lax.Precision.HIGHEST
                             if self.matmul_dtype == np.dtype(np.float32)
                             else jax.lax.Precision.DEFAULT)

        # Deterministic "parameters": hann window (periodic) + real-DFT bases.
        n = np.arange(win_length, dtype=np.float64)
        window = 0.5 * (1.0 - np.cos(2.0 * np.pi * n / win_length))
        if win_length < n_fft:                          # center-pad window like torch.stft
            lp = (n_fft - win_length) // 2
            window = np.pad(window, (lp, n_fft - win_length - lp))

        k = np.arange(self.n_freq, dtype=np.float64)
        t = np.arange(n_fft, dtype=np.float64)
        ang = 2.0 * np.pi * np.outer(t, k) / n_fft      # (n_fft, n_freq)
        scale = 1.0 / math.sqrt(float(np.sum(window ** 2))) if normalized else 1.0

        # Concatenated [cos | -sin] basis, zero-padded to (n_fft_pad, 2*n_freq_pad).
        basis = np.zeros((self.n_fft_pad, 2 * self.n_freq_pad), dtype=np.float32)
        basis[:n_fft, :self.n_freq] = window[:, None] * np.cos(ang) * scale
        basis[:n_fft, self.n_freq_pad:self.n_freq_pad + self.n_freq] = (
            window[:, None] * (-np.sin(ang)) * scale)
        self.basis = jnp.asarray(basis, dtype=self.matmul_dtype)

        self._forward = jax.jit(self._forward_impl)

    def __call__(self, x: jax.Array) -> jax.Array:
        return self._forward(x)

    def _forward_impl(self, x: jax.Array) -> jax.Array:
        lead = x.shape[:-1]
        T = x.shape[-1]
        x2d = x.reshape((-1, T)).astype(jnp.float32)
        N = x2d.shape[0]

        # center=True reflect padding (small, XLA glue).
        pad = self.n_fft // 2
        x_pad = jnp.pad(x2d, ((0, 0), (pad, pad)), mode="reflect")
        T_pad = T + 2 * pad
        n_frames = 1 + (T_pad - self.n_fft) // self.hop_length

        # Frame-tile selection: multiples of 128 (lane-dense output stores), minimal frame
        # padding, and >= 2 total grid steps when possible (v7x dual-TensorCore balance).
        max_tf = max(128, (self.frame_tile // 128) * 128)
        cands = [c for c in (1024, 512, 256, 128) if c <= max_tf] or [128]
        tf = min(cands, key=lambda c: (_round_up(n_frames, c), -c))
        while tf > 128 and N * (_round_up(n_frames, tf) // tf) < 2:
            tf //= 2
        n_frames_pad = _round_up(n_frames, tf)
        n_ft = n_frames_pad // tf
        total_tiles = N * n_ft

        # Build frames (N, n_frames_pad, n_fft_pad) directly in the matmul dtype with ONE
        # gather: out-of-range frame rows / fft columns index an appended zero sample, so the
        # padded regions are exactly 0 and no extra full-array jnp.pad pass is needed.
        # TODO(synk): move framing fully into the kernel (memory_space=pl.ANY on x_pad + per-tile
        # make_async_copy of the contiguous hop*tf + n_fft sample span) to remove the
        # ~n_fft/hop x HBM duplication of the audio through the materialized frames array.
        x_pad = x_pad.astype(self.matmul_dtype)
        x_pad_z = jnp.pad(x_pad, ((0, 0), (0, 1)))      # one zero sample per row
        fidx = jnp.arange(n_frames_pad, dtype=jnp.int32)[:, None]
        cidx = jnp.arange(self.n_fft_pad, dtype=jnp.int32)[None, :]
        gather_idx = fidx * self.hop_length + cidx
        in_range = (fidx < n_frames) & (cidx < self.n_fft)
        gather_idx = jnp.where(in_range, gather_idx, T_pad)   # -> the zero sample
        frames = x_pad_z[:, gather_idx]                 # (N, n_frames_pad, n_fft_pad)

        F = self.n_freq_pad
        n_freq8 = self.n_freq8
        kernel = functools.partial(
            _spec_power_kernel, n_freq=self.n_freq, n_freq_pad=F, n_freq8=n_freq8,
            n_frames=n_frames, tf=tf, precision=self.mm_precision)

        elem = self.matmul_dtype.itemsize
        cost = pl.CostEstimate(
            flops=2 * N * n_frames_pad * self.n_fft_pad * 2 * F,
            transcendentals=0,
            bytes_accessed=(N * n_frames_pad * self.n_fft_pad * elem   # frames
                            + self.n_fft_pad * 2 * F * elem            # basis
                            + N * n_freq8 * n_frames_pad * 4           # power out
                            + total_tiles * 8 * 128 * 4))              # partial stats

        p_full, stats_raw = pl.pallas_call(
            kernel,
            out_shape=(jax.ShapeDtypeStruct((N, n_freq8, n_frames_pad), jnp.float32),
                       jax.ShapeDtypeStruct((total_tiles * 8, 128), jnp.float32)),
            grid=(N, n_ft),
            in_specs=[
                pl.BlockSpec((1, tf, self.n_fft_pad), lambda b, j: (b, j, 0)),
                pl.BlockSpec((self.n_fft_pad, 2 * F), lambda b, j: (0, 0)),
            ],
            out_specs=(
                pl.BlockSpec((1, n_freq8, tf), lambda b, j: (b, 0, j)),
                pl.BlockSpec((8, 128), lambda b, j: (b * n_ft + j, 0)),
            ),
            compiler_params=pltpu.CompilerParams(
                dimension_semantics=("parallel", "parallel"),
                # ~10-20 MiB actually used at the default bf16 / tf<=512 config; 48 MiB leaves
                # headroom for f32 / tf=1024 while staying inside v7x's 64 MiB per-TC VMEM.
                vmem_limit_bytes=48 * 1024 * 1024),
            cost_estimate=cost,
        )(frames, self.basis)

        # ---- Pass 2: finalize scalars from per-tile partials, then memory-bound normalize.
        stats = stats_raw.reshape(total_tiles, 8, 128)[:, :, 0]
        count = N * n_frames * self.n_freq                       # valid-region element count
        total_sum = jnp.sum(stats[:, 0])
        total_ssq = jnp.sum(stats[:, 1])
        g_min = jnp.min(stats[:, 2])
        g_max = jnp.max(stats[:, 3])

        mean = total_sum / count
        denom = max(count - 1, 1)                                # torch.std is unbiased (ddof=1)
        # TODO(synk): E[x^2]-E[x]^2 finalize in f32 can lose precision for huge / unnormalized
        # inputs; switch to per-tile Welford (count, mean, M2) partials if that ever matters.
        var = jnp.maximum((total_ssq - count * mean * mean) / denom, 0.0)
        std = jnp.sqrt(var)

        # torch.where(std==0, x-mean, (x-mean)/std) -> multiply by 1/std (or 1 if std==0).
        inv_std = jnp.where(std == 0.0, 1.0, 1.0 / std)
        x1_min = (g_min - mean) * inv_std                        # affine map preserves min/max
        x1_max = (g_max - mean) * inv_std
        rng = x1_max - x1_min
        inv_rng = jnp.where(rng == 0.0, 1.0, 1.0 / rng)

        p = p_full[:, :self.n_freq, :n_frames]                   # drop sublane/lane padding
        y = ((p - mean) * inv_std - x1_min) * inv_rng            # multiplies only
        return y.reshape(lead + (self.n_freq, n_frames))         # already (..., n_freq, n_frames)


def _reference(x, n_fft, win_length, hop, normalized):
    """Pure-JAX reference (rfft) replicating the torch module semantics."""
    window = 0.5 * (1.0 - jnp.cos(2.0 * jnp.pi * jnp.arange(win_length) / win_length))
    pad = n_fft // 2
    x2d = x.reshape(-1, x.shape[-1])
    xp = jnp.pad(x2d, ((0, 0), (pad, pad)), mode="reflect")
    n_frames = 1 + (xp.shape[-1] - n_fft) // hop
    idx = jnp.arange(n_frames)[:, None] * hop + jnp.arange(n_fft)[None, :]
    fr = xp[:, idx] * window
    X = jnp.fft.rfft(fr, n=n_fft, axis=-1)
    p = jnp.abs(X) ** 2
    if normalized:
        p = p / jnp.sum(window ** 2)
    mean = p.mean()
    std = p.std(ddof=1)
    x1 = jnp.where(std == 0, p - mean, (p - mean) / std)
    mn, mx = x1.min(), x1.max()
    y = jnp.where(mx - mn == 0, x1 - mn, (x1 - mn) / (mx - mn))
    y = y.reshape(x.shape[:-1] + (n_frames, n_fft // 2 + 1))
    return jnp.swapaxes(y, -1, -2)


if __name__ == "__main__":
    key = jax.random.PRNGKey(0)
    # small shapes: batch=2, channels=3, time=1024 samples; n_fft=256, hop=64
    x = jax.random.normal(key, (2, 3, 1024), dtype=jnp.float32)

    # Default (bf16 MXU) path.
    spec = Spectrogram(sample_rate=16000, n_fft=256, win_length=256,
                       hop_length=64, normalized=True)
    y = jax.block_until_ready(spec(x))

    n_freq, n_frames = 256 // 2 + 1, 1 + 1024 // 64
    assert y.shape == (2, 3, n_freq, n_frames), y.shape
    assert y.dtype == jnp.float32
    assert bool(jnp.all(jnp.isfinite(y)))
    # min-max scaling guarantees values in [0, 1] (up to fp rounding)
    assert float(jnp.min(y)) >= -1e-5 and float(jnp.max(y)) <= 1.0 + 1e-5

    y_ref = _reference(x, 256, 256, 64, True)
    # bf16 MXU inputs: looser tolerance on the [0,1]-scaled output.
    err_bf16 = float(jnp.max(jnp.abs(y - y_ref)))
    assert err_bf16 < 5e-2, err_bf16

    # f32 matmul path (Precision.HIGHEST) checked tightly against the rfft reference.
    spec_f32 = Spectrogram(sample_rate=16000, n_fft=256, win_length=256,
                           hop_length=64, normalized=True, matmul_dtype=jnp.float32)
    y32 = jax.block_until_ready(spec_f32(x))
    err_f32 = float(jnp.max(jnp.abs(y32 - y_ref)))
    assert err_f32 < 5e-3, err_f32

    print("KERNEL_OK")
</pallas_src>

<mosaic_0001>
module attributes {stable_mosaic.version = 11 : i64} {
  func.func @_spec_power_kernel(%arg0: i32, %arg1: i32, %arg2: memref<1x128x256xbf16, #tpu.memory_space<vmem>>, %arg3: memref<256x512xbf16, #tpu.memory_space<vmem>>, %arg4: memref<1x136x128xf32, #tpu.memory_space<vmem>>, %arg5: memref<8x128xf32, #tpu.memory_space<vmem>>) attributes {dimension_semantics = [#tpu.dimension_semantics<parallel>, #tpu.dimension_semantics<parallel>], iteration_bounds = array<i64: 6, 1>, scalar_prefetch = 0 : i64, scratch_operands = 0 : i64, tpu.core_type = #tpu.core_type<tc>, window_params = [{transform_indices = @transform_0, window_bounds = array<i64: 1, 128, 256>}, {pipeline_mode = #tpu.pipeline_mode<synchronous>, transform_indices = @transform_1, window_bounds = array<i64: 256, 512>}, {transform_indices = @transform_2, window_bounds = array<i64: 1, 136, 128>}, {transform_indices = @transform_3, window_bounds = array<i64: 8, 128>}]} {
    %c0 = arith.constant 0 : index
    %c0_0 = arith.constant 0 : index
    %c0_1 = arith.constant 0 : index
    %0 = vector.load %arg2[%c0, %c0_0, %c0_1] : memref<1x128x256xbf16, #tpu.memory_space<vmem>>, vector<1x128x256xbf16>
    %1 = vector.shape_cast %0 : vector<1x128x256xbf16> to vector<128x256xbf16>
    %c0_2 = arith.constant 0 : index
    %c0_3 = arith.constant 0 : index
    %2 = vector.load %arg3[%c0_2, %c0_3] : memref<256x512xbf16, #tpu.memory_space<vmem>>, vector<256x512xbf16>
    %cst = arith.constant dense<0.000000e+00> : vector<128x512xf32>
    %3 = tpu.matmul %1, %2, %cst {dimension_numbers = #tpu.dot_dimension_numbers<[1], [0], [0], [1], [0, 0, 1, 1], [], []>} : vector<128x256xbf16>, vector<256x512xbf16>, vector<128x512xf32> -> vector<128x512xf32>
    %4 = vector.extract_strided_slice %3 {offsets = [0, 0], sizes = [128, 256], strides = [1, 1]} : vector<128x512xf32> to vector<128x256xf32>
    %5 = vector.extract_strided_slice %3 {offsets = [0, 256], sizes = [128, 256], strides = [1, 1]} : vector<128x512xf32> to vector<128x256xf32>
    %6 = arith.mulf %4, %4 : vector<128x256xf32>
    %7 = arith.mulf %5, %5 : vector<128x256xf32>
    %8 = arith.addf %6, %7 : vector<128x256xf32>
    %9 = vector.shape_cast %8 : vector<128x256xf32> to vector<1x128x256xf32>
    %cst_4 = arith.constant dense<0.000000e+00> : vector<1xf32>
    %10 = vector.multi_reduction <add>, %9, %cst_4 [1, 2] : vector<1x128x256xf32> to vector<1xf32>
    %11 = vector.shape_cast %10 : vector<1xf32> to vector<1x1x1xf32>
    %12 = vector.extract %11[0, 0, 0] : f32 from vector<1x1x1xf32>
    %13 = arith.mulf %8, %8 : vector<128x256xf32>
    %14 = vector.shape_cast %13 : vector<128x256xf32> to vector<1x128x256xf32>
    %cst_5 = arith.constant dense<0.000000e+00> : vector<1xf32>
    %15 = vector.multi_reduction <add>, %14, %cst_5 [1, 2] : vector<1x128x256xf32> to vector<1xf32>
    %16 = vector.shape_cast %15 : vector<1xf32> to vector<1x1x1xf32>
    %17 = vector.extract %16[0, 0, 0] : f32 from vector<1x1x1xf32>
    %18 = vector.shape_cast %8 : vector<128x256xf32> to vector<1x128x256xf32>
    %cst_6 = arith.constant dense<0xFF800000> : vector<1xf32>
    %19 = vector.multi_reduction <maximumf>, %18, %cst_6 [1, 2] : vector<1x128x256xf32> to vector<1xf32>
    %20 = vector.shape_cast %19 : vector<1xf32> to vector<1x1x1xf32>
    %21 = vector.extract %20[0, 0, 0] : f32 from vector<1x1x1xf32>
    %22 = tpu.iota {dimensions = array<i32: 0>} : vector<128x256xi32>
    %c128_i32 = arith.constant 128 : i32
    %23 = arith.muli %arg1, %c128_i32 : i32
    %24 = vector.broadcast %23 : i32 to vector<128x256xi32>
    %25 = arith.addi %22, %24 : vector<128x256xi32>
    %26 = tpu.iota {dimensions = array<i32: 1>} : vector<128x256xi32>
    %c17_i32 = arith.constant 17 : i32
    %27 = vector.broadcast %c17_i32 : i32 to vector<128x256xi32>
    %28 = arith.cmpi slt, %25, %27 : vector<128x256xi32>
    %c129_i32 = arith.constant 129 : i32
    %29 = vector.broadcast %c129_i32 : i32 to vector<128x256xi32>
    %30 = arith.cmpi slt, %26, %29 : vector<128x256xi32>
    %31 = arith.andi %28, %30 : vector<128x256xi1>
    %cst_7 = arith.constant 0x7F800000 : f32
    %32 = vector.broadcast %cst_7 : f32 to vector<128x256xf32>
    %33 = arith.select %31, %8, %32 : vector<128x256xi1>, vector<128x256xf32>
    %34 = vector.shape_cast %33 : vector<128x256xf32> to vector<1x128x256xf32>
    %cst_8 = arith.constant dense<0x7F800000> : vector<1xf32>
    %35 = vector.multi_reduction <minimumf>, %34, %cst_8 [1, 2] : vector<1x128x256xf32> to vector<1xf32>
    %36 = vector.shape_cast %35 : vector<1xf32> to vector<1x1x1xf32>
    %37 = vector.extract %36[0, 0, 0] : f32 from vector<1x1x1xf32>
    %38 = tpu.transpose %8, [1, 0] : vector<128x256xf32> -> vector<256x128xf32>
    %39 = vector.extract_strided_slice %38 {offsets = [0, 0], sizes = [136, 128], strides = [1, 1]} : vector<256x128xf32> to vector<136x128xf32>
    %c0_9 = arith.constant 0 : index
    %c0_10 = arith.constant 0 : index
    %c0_11 = arith.constant 0 : index
    %40 = vector.load %arg4[%c0_9, %c0_10, %c0_11] : memref<1x136x128xf32, #tpu.memory_space<vmem>>, vector<1x136x128xf32>
    %41 = vector.shape_cast %40 : vector<1x136x128xf32> to vector<136x128xf32>
    %42 = vector.shape_cast %39 : vector<136x128xf32> to vector<1x136x128xf32>
    tpu.vector_store %arg4[%c0_9, %c0_10, %c0_11], %42 {strides = array<i32>} : memref<1x136x128xf32, #tpu.memory_space<vmem>>, vector<1x136x128xf32>,
    %43 = tpu.iota {dimensions = array<i32: 0>} : vector<8x128xi32>
    %c0_i32 = arith.constant 0 : i32
    %44 = vector.broadcast %c0_i32 : i32 to vector<8x128xi32>
    %45 = arith.cmpi eq, %43, %44 : vector<8x128xi32>
    %c1_i32 = arith.constant 1 : i32
    %46 = vector.broadcast %c1_i32 : i32 to vector<8x128xi32>
    %47 = arith.cmpi eq, %43, %46 : vector<8x128xi32>
    %c2_i32 = arith.constant 2 : i32
    %48 = vector.broadcast %c2_i32 : i32 to vector<8x128xi32>
    %49 = arith.cmpi eq, %43, %48 : vector<8x128xi32>
    %c3_i32 = arith.constant 3 : i32
    %50 = vector.broadcast %c3_i32 : i32 to vector<8x128xi32>
    %51 = arith.cmpi eq, %43, %50 : vector<8x128xi32>
    %cst_12 = arith.constant 0.000000e+00 : f32
    %52 = vector.broadcast %21 : f32 to vector<8x128xf32>
    %53 = vector.broadcast %cst_12 : f32 to vector<8x128xf32>
    %54 = arith.select %51, %52, %53 : vector<8x128xi1>, vector<8x128xf32>
    %55 = vector.broadcast %37 : f32 to vector<8x128xf32>
    %56 = arith.select %49, %55, %54 : vector<8x128xi1>, vector<8x128xf32>
    %57 = vector.broadcast %17 : f32 to vector<8x128xf32>
    %58 = arith.select %47, %57, %56 : vector<8x128xi1>, vector<8x128xf32>
    %59 = vector.broadcast %12 : f32 to vector<8x128xf32>
    %60 = arith.select %45, %59, %58 : vector<8x128xi1>, vector<8x128xf32>
    %c0_13 = arith.constant 0 : index
    %c0_14 = arith.constant 0 : index
    %61 = vector.load %arg5[%c0_13, %c0_14] : memref<8x128xf32, #tpu.memory_space<vmem>>, vector<8x128xf32>
    tpu.vector_store %arg5[%c0_13, %c0_14], %60 {strides = array<i32>} : memref<8x128xf32, #tpu.memory_space<vmem>>, vector<8x128xf32>,
    return
  }
  func.func @transform_0(%arg0: i32, %arg1: i32) -> (i32, i32, i32) {
    %c0_i32 = arith.constant 0 : i32
    %c0_i32_0 = arith.constant 0 : i32
    return %arg0, %arg1, %c0_i32 : i32, i32, i32
  }
  func.func @transform_1(%arg0: i32, %arg1: i32) -> (i32, i32) {
    %c0_i32 = arith.constant 0 : i32
    %c0_i32_0 = arith.constant 0 : i32
    %c0_i32_1 = arith.constant 0 : i32
    return %c0_i32, %c0_i32_0 : i32, i32
  }
  func.func @transform_2(%arg0: i32, %arg1: i32) -> (i32, i32, i32) {
    %c0_i32 = arith.constant 0 : i32
    %c0_i32_0 = arith.constant 0 : i32
    return %arg0, %c0_i32, %arg1 : i32, i32, i32
  }
  func.func @transform_3(%arg0: i32, %arg1: i32) -> (i32, i32) {
    %c1_i32 = arith.constant 1 : i32
    %0 = arith.muli %arg0, %c1_i32 : i32
    %1 = arith.addi %0, %arg1 : i32
    %c0_i32 = arith.constant 0 : i32
    %c0_i32_0 = arith.constant 0 : i32
    return %1, %c0_i32 : i32, i32
  }
}

</mosaic_0001>

<llo_original>
// kernel: _forward_impl.1
$region0: #{_forward_impl.1}
  #allocation0 [shape = 'u32[]', space=smem, size = 0x4, offset = 0x4, fixed_abs, tag = 'smem constant byte address 0x4 - core index']
  #allocation1 [shape = 'u32[144,128]{1,0:T(1,128)}', space=vmem, size = 0x12000, scoped, tag = 'internal scratch']
  %s0 = inlined_call_operand.vmem [shape: bf16[6,128,256], index: 0, kind: input, shape index: {}]
  %s1 = inlined_call_operand.vmem [shape: bf16[256,512], index: 1, kind: input, shape index: {}]
  %s2 = inlined_call_operand.vmem [shape: f32[6,136,128], index: 2, kind: output, shape index: {0}]
  %s3 = inlined_call_operand.vmem [shape: f32[48,128], index: 3, kind: output, shape index: {1}]
  %4 = xla_tuple %s2, %s3
  %s5 = sld [smem:[#allocation0]]
  $region49: #{_forward_impl.1} parent=0
    _
  %s7 = ssub.s32 1, %s5
  %s8 = scalar_select 0, %s7, %s5
  loop: start=0, step=1, limit=8
  $region2: #{_forward_impl.1} parent=0 // loop_pre_header
    _
  $region3: #{_forward_impl.1} parent=0 // loop_header
    %s10 = sphi 0, %s14
    %p11 = scmp.ge.s32.totalorder %s10, 8
    %s17 = sphi 0, %s29
    %s18 = sphi 0, %s25
    %s19 = sphi 0, %s17
    %s20 = sphi 0, %s18
    %s21 = sphi 0, %s19
    %s22 = sphi 0, %s20
    %s34 = sphi 0, %s36
    %s37 = sphi 0, %s34
    %s38 = sphi 0, %s37
    %s54 = sphi 0, %s38
    %s58 = sphi 0, %s58
    %s60 = sphi 0, %s58
    %s61 = sphi 0, %s60
    %s75 = sphi 0, %s61
    %s83 = sphi 0, %s85
    %s86 = sphi 0, %s83
    %s87 = sphi 0, %s86
    %s103 = sphi 0, %s87
    %s111 = sphi 0, %s113
    %s114 = sphi 0, %s111
    %s115 = sphi 0, %s114
    %s131 = sphi 0, %s115
  $region4: #{_forward_impl.1} parent=0 // loop_header_branch
    %13 = sbr.rel (%p11) target = $region8
  $region5: #{_forward_impl.1} parent=0 // loop_body
    %s15 = ssub.s32 %s10, 1
    %s16 = ssub.s32 %s10, 2
    %s23 = sadd.s32 1, %s18
    %p24 = scmp.ge.s32.totalorder %s23, 1
    %s25 = scalar_select %p24, 0, %s23
    %s26 = sadd.s32 1, %s17
    %s27 = scalar_select %p24, %s26, %s17
    %p28 = scmp.ge.s32.totalorder %s27, 6
    %s29 = scalar_select %p28, 0, %s27
    %s30 = ssub.s32 %s17, %s29
    %s31 = ssub.s32 %s18, %s25
    %s32 = sor.u32 %s30, %s31
    %p33 = scmp.eq.s32.totalorder %s32, 0
    %s35 = sadd.s32 %s34, 1
    %s36 = scalar_select %p33, %s34, %s35
    %p39 = pneg %p33
    %p40 = scmp.eq.s32.totalorder %s10, 5
    %p41 = por %p39, %p40
    %p42 = scmp.ne.s32.totalorder %s34, %s37
    %p43 = scmp.eq.s32.totalorder %s10, 0
    %p44 = por %p42, %p43
    %p45 = scmp.ne.s32.totalorder %s34, %s37
    %p46 = scmp.eq.s32.totalorder %s15, 5
    %p47 = por %p45, %p46
    %p48 = scmp.ne.s32.totalorder %s37, %s38
    %p49 = scmp.eq.s32.totalorder %s15, 0
    %p50 = por %p48, %p49
    %p51 = scmp.ne.s32.totalorder %s37, %s38
    %p52 = scmp.eq.s32.totalorder %s16, 5
    %p53 = por %p51, %p52
    %p55 = scmp.ne.s32.totalorder %s38, %s54
    %p56 = scmp.eq.s32.totalorder %s16, 0
    %p57 = por %p55, %p56
    %s59 = sadd.s32 %s58, 1
    %p62 = scmp.eq.s32.totalorder %s10, 5
    %p63 = scmp.ne.s32.totalorder %s58, %s60
    %p64 = scmp.eq.s32.totalorder %s10, 0
    %p65 = por %p63, %p64
    %p66 = scmp.ne.s32.totalorder %s58, %s60
    %p67 = scmp.eq.s32.totalorder %s15, 5
    %p68 = por %p66, %p67
    %p69 = scmp.ne.s32.totalorder %s60, %s61
    %p70 = scmp.eq.s32.totalorder %s15, 0
    %p71 = por %p69, %p70
    %p72 = scmp.ne.s32.totalorder %s60, %s61
    %p73 = scmp.eq.s32.totalorder %s16, 5
    %p74 = por %p72, %p73
    %p76 = scmp.ne.s32.totalorder %s61, %s75
    %p77 = scmp.eq.s32.totalorder %s16, 0
    %p78 = por %p76, %p77
    %s79 = ssub.s32 %s17, %s29
    %s80 = ssub.s32 %s18, %s25
    %s81 = sor.u32 %s79, %s80
    %p82 = scmp.eq.s32.totalorder %s81, 0
    %s84 = sadd.s32 %s83, 1
    %s85 = scalar_select %p82, %s83, %s84
    %p88 = pneg %p82
    %p89 = scmp.eq.s32.totalorder %s10, 5
    %p90 = por %p88, %p89
    %p91 = scmp.ne.s32.totalorder %s83, %s86
    %p92 = scmp.eq.s32.totalorder %s10, 0
    %p93 = por %p91, %p92
    %p94 = scmp.ne.s32.totalorder %s83, %s86
    %p95 = scmp.eq.s32.totalorder %s15, 5
    %p96 = por %p94, %p95
    %p97 = scmp.ne.s32.totalorder %s86, %s87
    %p98 = scmp.eq.s32.totalorder %s15, 0
    %p99 = por %p97, %p98
    %p100 = scmp.ne.s32.totalorder %s86, %s87
    %p101 = scmp.eq.s32.totalorder %s16, 5
    %p102 = por %p100, %p101
    %p104 = scmp.ne.s32.totalorder %s87, %s103
    %p105 = scmp.eq.s32.totalorder %s16, 0
    %p106 = por %p104, %p105
    %s107 = sadd.s32 %s17, %s18
    %s108 = sadd.s32 %s29, %s25
    %s109 = ssub.s32 %s107, %s108
    %p110 = scmp.eq.s32.totalorder %s109, 0
    %s112 = sadd.s32 %s111, 1
    %s113 = scalar_select %p110, %s111, %s112
    %p116 = pneg %p110
    %p117 = scmp.eq.s32.totalorder %s10, 5
    %p118 = por %p116, %p117
    %p119 = scmp.ne.s32.totalorder %s111, %s114
    %p120 = scmp.eq.s32.totalorder %s10, 0
    %p121 = por %p119, %p120
    %p122 = scmp.ne.s32.totalorder %s111, %s114
    %p123 = scmp.eq.s32.totalorder %s15, 5
    %p124 = por %p122, %p123
    %p125 = scmp.ne.s32.totalorder %s114, %s115
    %p126 = scmp.eq.s32.totalorder %s15, 0
    %p127 = por %p125, %p126
    %p128 = scmp.ne.s32.totalorder %s114, %s115
    %p129 = scmp.eq.s32.totalorder %s16, 5
    %p130 = por %p128, %p129
    %p132 = scmp.ne.s32.totalorder %s115, %s131
    %p133 = scmp.eq.s32.totalorder %s16, 0
    %p134 = por %p132, %p133
    %p135 = scmp.le.s32.totalorder 1, %s10
    %p136 = scmp.lt.s32.totalorder %s10, 7
    %p137 = pnand %p135, %p136
    %p138 = pneg %p137
    // Predicated region
    $region9: #{_forward_impl.1} parent=5 // pred_check
      _
    $region10: #{_forward_impl.1} parent=5 // pred_check_branch
      %140 = sbr.rel (%p137) target = $region12
    $region11: #{_forward_impl.1} parent=5 // pred_region
      %s141 = ssub.s32 %s10, 1
      // Predicated region
      $region13: #{_forward_impl.1} parent=11 // pred_check
        %p142 = pneg %p71
      $region14: #{_forward_impl.1} parent=11 // pred_check_branch
        %144 = sbr.rel (%p142) target = $region16
      $region15: #{_forward_impl.1} parent=11 // pred_region
        _
      $region16: #{_forward_impl.1} parent=11 // pred_fallthru
        _
    $region12: #{_forward_impl.1} parent=5 // pred_fallthru
      _
    %p145 = scmp.lt.s32.totalorder %s10, 6
    // Predicated region
    $region17: #{_forward_impl.1} parent=5 // pred_check
      %p146 = pneg %p145
    $region18: #{_forward_impl.1} parent=5 // pred_check_branch
      %148 = sbr.rel (%p146) target = $region20
    $region19: #{_forward_impl.1} parent=5 // pred_region
      // Predicated region
      $region21: #{_forward_impl.1} parent=19 // pred_check
        %p149 = pneg %p44
      $region22: #{_forward_impl.1} parent=19 // pred_check_branch
        %151 = sbr.rel (%p149) target = $region24
      $region23: #{_forward_impl.1} parent=19 // pred_region
        %s152 = smul.u32 16, %s18
        %p153 = scmp.lt.s32.totalorder %s17, 5
        %s154 = scalar_select %p153, %s17, 5
        %p155 = scmp.lt.s32.totalorder %s152, 15
        %s156 = scalar_select %p155, %s152, 15
        %s157 = smul.addr %s156, 2
        %s158 = smul.addr %s154, 32
        %s159 = sadd.s32 %s157, %s158
        %s160 = smul.addr %s159, 4
        %s161 = scalar_lea.vmem %s0, %s160
        %s162 = smul.u32 16, %s18
      $region24: #{_forward_impl.1} parent=19 // pred_fallthru
        _
    $region20: #{_forward_impl.1} parent=5 // pred_fallthru
      _
    %p163 = scmp.le.s32.totalorder 1, %s10
    %p164 = scmp.lt.s32.totalorder %s10, 7
    %p165 = pnand %p163, %p164
    %p166 = pneg %p165
    // Predicated region
    $region25: #{_forward_impl.1} parent=5 // pred_check
      _
    $region26: #{_forward_impl.1} parent=5 // pred_check_branch
      %168 = sbr.rel (%p165) target = $region28
    $region27: #{_forward_impl.1} parent=5 // pred_region
      %s169 = ssub.s32 %s10, 1
      %s170 = smul.u32 16, %s20
      %p171 = scmp.lt.s32.totalorder %s19, 5
      %s172 = scalar_select %p171, %s19, 5
      %p173 = scmp.lt.s32.totalorder %s170, 15
      %s174 = scalar_select %p173, %s170, 15
      %s175 = smul.addr %s174, 2
      %s176 = smul.addr %s172, 32
      %s177 = sadd.s32 %s175, %s176
      %s178 = smul.addr %s177, 4
      %s179 = scalar_lea.vmem %s0, %s178
      %p180 = pneg %p50
      %p181 = pneg %p47
      %p182 = pneg %p71
      %p183 = pneg %p68
      %p184 = pneg %p99
      %p185 = pneg %p96
      %p186 = scmp.lt.s32.totalorder %s19, 5
      %s187 = scalar_select %p186, %s19, 5
      %p188 = scmp.lt.s32.totalorder %s20, 0
      %s189 = scalar_select %p188, %s20, 0
      %s190 = smul.addr %s187, 17
      %s191 = sadd.s32 %s189, %s190
      %s192 = smul.addr %s191, 8
      %s193 = scalar_lea.vmem %s2, %s192
      %p194 = pneg %p127
      %p195 = pneg %p124
      %s196 = sadd.s32 %s19, %s20
      %p197 = scmp.lt.s32.totalorder %s196, 5
      %s198 = scalar_select %p197, %s196, 5
      %s199 = smul.addr %s198, 8
      %s200 = scalar_lea.vmem %s3, %s199
      %s201 = smul.u32 16, %s20
      %p202 = scmp.lt.s32.totalorder %s19, 5
      %s203 = scalar_select %p202, %s19, 5
      %p204 = scmp.lt.s32.totalorder %s201, 15
      %s205 = scalar_select %p204, %s201, 15
      %s206 = smul.addr %s205, 2
      %s207 = smul.addr %s203, 32
      %s208 = sadd.s32 %s206, %s207
      %s209 = smul.addr %s208, 4
      %s210 = scalar_lea.vmem %s0, %s209
      %s211 = smul.u32 16, %s20
      %p212 = scmp.lt.s32.totalorder %s19, 5
      %s213 = scalar_select %p212, %s19, 5
      %p214 = scmp.lt.s32.totalorder %s20, 0
      %s215 = scalar_select %p214, %s20, 0
      %s216 = smul.addr %s213, 17
      %s217 = sadd.s32 %s215, %s216
      %s218 = smul.addr %s217, 8
      %s219 = scalar_lea.vmem %s2, %s218
      %s220 = sadd.s32 %s19, %s20
      %p221 = scmp.lt.s32.totalorder %s220, 5
      %s222 = scalar_select %p221, %s220, 5
      %s223 = smul.addr %s222, 8
      %s224 = scalar_lea.vmem %s3, %s223
      %s225 = sadd.s32 %s19, %s20
      %v226 = vld [vmem:[%s210] sm:$0xff]
      %v227 = vld [vmem:[%s210 + $0x8] sm:$0xff]
      %v228 = vld [vmem:[%s210 + $0x10] sm:$0xff]
      %v229 = vld [vmem:[%s210 + $0x18] sm:$0xff]
      %v230 = vld [vmem:[%s210 + $0x20] sm:$0xff]
      %v231 = vld [vmem:[%s210 + $0x28] sm:$0xff]
      %v232 = vld [vmem:[%s210 + $0x30] sm:$0xff]
      %v233 = vld [vmem:[%s210 + $0x38] sm:$0xff]
      %v234 = vld [vmem:[%s210 + $0x40] sm:$0xff]
      %v235 = vld [vmem:[%s210 + $0x48] sm:$0xff]
      %v236 = vld [vmem:[%s210 + $0x50] sm:$0xff]
      %v237 = vld [vmem:[%s210 + $0x58] sm:$0xff]
      %v238 = vld [vmem:[%s210 + $0x60] sm:$0xff]
      %v239 = vld [vmem:[%s210 + $0x68] sm:$0xff]
      %v240 = vld [vmem:[%s210 + $0x70] sm:$0xff]
      %v241 = vld [vmem:[%s210 + $0x78] sm:$0xff]
      %v242 = vld [vmem:[%s1] sm:$0xff]
      %v243 = vld [vmem:[%s1 + $0x8] sm:$0xff]
      %v244 = vld [vmem:[%s1 + $0x10] sm:$0xff]
      %v245 = vld [vmem:[%s1 + $0x18] sm:$0xff]
      %v246 = vld [vmem:[%s1 + $0x20] sm:$0xff]
      %v247 = vld [vmem:[%s1 + $0x28] sm:$0xff]
      %v248 = vld [vmem:[%s1 + $0x30] sm:$0xff]
      %v249 = vld [vmem:[%s1 + $0x38] sm:$0xff]
      %v250 = vld [vmem:[%s1 + $0x40] sm:$0xff]
      %v251 = vld [vmem:[%s1 + $0x48] sm:$0xff]
      %v252 = vld [vmem:[%s1 + $0x50] sm:$0xff]
      %v253 = vld [vmem:[%s1 + $0x58] sm:$0xff]
      %v254 = vld [vmem:[%s1 + $0x60] sm:$0xff]
      %v255 = vld [vmem:[%s1 + $0x68] sm:$0xff]
      %v256 = vld [vmem:[%s1 + $0x70] sm:$0xff]
      %v257 = vld [vmem:[%s1 + $0x78] sm:$0xff]
      %v258 = vld [vmem:[%s1 + $0x80] sm:$0xff]
      %v259 = vld [vmem:[%s1 + $0x88] sm:$0xff]
      %v260 = vld [vmem:[%s1 + $0x90] sm:$0xff]
      %v261 = vld [vmem:[%s1 + $0x98] sm:$0xff]
      %v262 = vld [vmem:[%s1 + $0xa0] sm:$0xff]
      %v263 = vld [vmem:[%s1 + $0xa8] sm:$0xff]
      %v264 = vld [vmem:[%s1 + $0xb0] sm:$0xff]
      %v265 = vld [vmem:[%s1 + $0xb8] sm:$0xff]
      %v266 = vld [vmem:[%s1 + $0xc0] sm:$0xff]
      %v267 = vld [vmem:[%s1 + $0xc8] sm:$0xff]
      %v268 = vld [vmem:[%s1 + $0xd0] sm:$0xff]
      %v269 = vld [vmem:[%s1 + $0xd8] sm:$0xff]
      %v270 = vld [vmem:[%s1 + $0xe0] sm:$0xff]
      %v271 = vld [vmem:[%s1 + $0xe8] sm:$0xff]
      %v272 = vld [vmem:[%s1 + $0xf0] sm:$0xff]
      %v273 = vld [vmem:[%s1 + $0xf8] sm:$0xff]
      %v274 = vld [vmem:[%s1 + $0x100] sm:$0xff]
      %v275 = vld [vmem:[%s1 + $0x108] sm:$0xff]
      %v276 = vld [vmem:[%s1 + $0x110] sm:$0xff]
      %v277 = vld [vmem:[%s1 + $0x118] sm:$0xff]
      %v278 = vld [vmem:[%s1 + $0x120] sm:$0xff]
      %v279 = vld [vmem:[%s1 + $0x128] sm:$0xff]
      %v280 = vld [vmem:[%s1 + $0x130] sm:$0xff]
      %v281 = vld [vmem:[%s1 + $0x138] sm:$0xff]
      %v282 = vld [vmem:[%s1 + $0x140] sm:$0xff]
      %v283 = vld [vmem:[%s1 + $0x148] sm:$0xff]
      %v284 = vld [vmem:[%s1 + $0x150] sm:$0xff]
      %v285 = vld [vmem:[%s1 + $0x158] sm:$0xff]
      %v286 = vld [vmem:[%s1 + $0x160] sm:$0xff]
      %v287 = vld [vmem:[%s1 + $0x168] sm:$0xff]
      %v288 = vld [vmem:[%s1 + $0x170] sm:$0xff]
      %v289 = vld [vmem:[%s1 + $0x178] sm:$0xff]
      %v290 = vld [vmem:[%s1 + $0x180] sm:$0xff]
      %v291 = vld [vmem:[%s1 + $0x188] sm:$0xff]
      %v292 = vld [vmem:[%s1 + $0x190] sm:$0xff]
      %v293 = vld [vmem:[%s1 + $0x198] sm:$0xff]
      %v294 = vld [vmem:[%s1 + $0x1a0] sm:$0xff]
      %v295 = vld [vmem:[%s1 + $0x1a8] sm:$0xff]
      %v296 = vld [vmem:[%s1 + $0x1b0] sm:$0xff]
      %v297 = vld [vmem:[%s1 + $0x1b8] sm:$0xff]
      %v298 = vld [vmem:[%s1 + $0x1c0] sm:$0xff]
      %v299 = vld [vmem:[%s1 + $0x1c8] sm:$0xff]
      %v300 = vld [vmem:[%s1 + $0x1d0] sm:$0xff]
      %v301 = vld [vmem:[%s1 + $0x1d8] sm:$0xff]
      %v302 = vld [vmem:[%s1 + $0x1e0] sm:$0xff]
      %v303 = vld [vmem:[%s1 + $0x1e8] sm:$0xff]
      %v304 = vld [vmem:[%s1 + $0x1f0] sm:$0xff]
      %v305 = vld [vmem:[%s1 + $0x1f8] sm:$0xff]
      %v322 = vunpack.c.l.b16 %v226
      %v323 = vunpack.c.h.b16 %v226
      %v324 = vunpack.c.l.b16 %v227
      %v325 = vunpack.c.h.b16 %v227
      %v326 = vunpack.c.l.b16 %v228
      %v327 = vunpack.c.h.b16 %v228
      %v328 = vunpack.c.l.b16 %v229
      %v329 = vunpack.c.h.b16 %v229
      %v330 = vunpack.c.l.b16 %v230
      %v331 = vunpack.c.h.b16 %v230
      %v332 = vunpack.c.l.b16 %v231
      %v333 = vunpack.c.h.b16 %v231
      %v334 = vunpack.c.l.b16 %v232
      %v335 = vunpack.c.h.b16 %v232
      %v336 = vunpack.c.l.b16 %v233
      %v337 = vunpack.c.h.b16 %v233
      %v338 = vunpack.c.l.b16 %v234
      %v339 = vunpack.c.h.b16 %v234
      %v340 = vunpack.c.l.b16 %v235
      %v341 = vunpack.c.h.b16 %v235
      %v342 = vunpack.c.l.b16 %v236
      %v343 = vunpack.c.h.b16 %v236
      %v344 = vunpack.c.l.b16 %v237
      %v345 = vunpack.c.h.b16 %v237
      %v346 = vunpack.c.l.b16 %v238
      %v347 = vunpack.c.h.b16 %v238
      %v348 = vunpack.c.l.b16 %v239
      %v349 = vunpack.c.h.b16 %v239
      %v350 = vunpack.c.l.b16 %v240
      %v351 = vunpack.c.h.b16 %v240
      %v352 = vunpack.c.l.b16 %v241
      %v353 = vunpack.c.h.b16 %v241
      %v354 = vpack.c.b16 %v324, %v322
      %v355 = vpack.c.b16 %v325, %v323
      %v356 = vpack.c.b16 %v328, %v326
      %v357 = vpack.c.b16 %v329, %v327
      %v358 = vpack.c.b16 %v332, %v330
      %v359 = vpack.c.b16 %v333, %v331
      %v360 = vpack.c.b16 %v336, %v334
      %v361 = vpack.c.b16 %v337, %v335
      %v362 = vpack.c.b16 %v340, %v338
      %v363 = vpack.c.b16 %v341, %v339
      %v364 = vpack.c.b16 %v344, %v342
      %v365 = vpack.c.b16 %v345, %v343
      %v366 = vpack.c.b16 %v348, %v346
      %v367 = vpack.c.b16 %v349, %v347
      %v368 = vpack.c.b16 %v352, %v350
      %v369 = vpack.c.b16 %v353, %v351
      %v450 = vunpack.c.l.b16 %v242
      %v451 = vunpack.c.h.b16 %v242
      %v452 = vunpack.c.l.b16 %v243
      %v453 = vunpack.c.h.b16 %v243
      %v454 = vunpack.c.l.b16 %v244
      %v455 = vunpack.c.h.b16 %v244
      %v456 = vunpack.c.l.b16 %v245
      %v457 = vunpack.c.h.b16 %v245
      %v458 = vunpack.c.l.b16 %v246
      %v459 = vunpack.c.h.b16 %v246
      %v460 = vunpack.c.l.b16 %v247
      %v461 = vunpack.c.h.b16 %v247
      %v462 = vunpack.c.l.b16 %v248
      %v463 = vunpack.c.h.b16 %v248
      %v464 = vunpack.c.l.b16 %v249
      %v465 = vunpack.c.h.b16 %v249
      %v466 = vunpack.c.l.b16 %v250
      %v467 = vunpack.c.h.b16 %v250
      %v468 = vunpack.c.l.b16 %v251
      %v469 = vunpack.c.h.b16 %v251
      %v470 = vunpack.c.l.b16 %v252
      %v471 = vunpack.c.h.b16 %v252
      %v472 = vunpack.c.l.b16 %v253
      %v473 = vunpack.c.h.b16 %v253
      %v474 = vunpack.c.l.b16 %v254
      %v475 = vunpack.c.h.b16 %v254
      %v476 = vunpack.c.l.b16 %v255
      %v477 = vunpack.c.h.b16 %v255
      %v478 = vunpack.c.l.b16 %v256
      %v479 = vunpack.c.h.b16 %v256
      %v480 = vunpack.c.l.b16 %v257
      %v481 = vunpack.c.h.b16 %v257
      %v482 = vunpack.c.l.b16 %v258
      %v483 = vunpack.c.h.b16 %v258
      %v484 = vunpack.c.l.b16 %v259
      %v485 = vunpack.c.h.b16 %v259
      %v486 = vunpack.c.l.b16 %v260
      %v487 = vunpack.c.h.b16 %v260
      %v488 = vunpack.c.l.b16 %v261
      %v489 = vunpack.c.h.b16 %v261
      %v490 = vunpack.c.l.b16 %v262
      %v491 = vunpack.c.h.b16 %v262
      %v492 = vunpack.c.l.b16 %v263
      %v493 = vunpack.c.h.b16 %v263
      %v494 = vunpack.c.l.b16 %v264
      %v495 = vunpack.c.h.b16 %v264
      %v496 = vunpack.c.l.b16 %v265
      %v497 = vunpack.c.h.b16 %v265
      %v498 = vunpack.c.l.b16 %v266
      %v499 = vunpack.c.h.b16 %v266
      %v500 = vunpack.c.l.b16 %v267
      %v501 = vunpack.c.h.b16 %v267
      %v502 = vunpack.c.l.b16 %v268
      %v503 = vunpack.c.h.b16 %v268
      %v504 = vunpack.c.l.b16 %v269
      %v505 = vunpack.c.h.b16 %v269
      %v506 = vunpack.c.l.b16 %v270
      %v507 = vunpack.c.h.b16 %v270
      %v508 = vunpack.c.l.b16 %v271
      %v509 = vunpack.c.h.b16 %v271
      %v510 = vunpack.c.l.b16 %v272
      %v511 = vunpack.c.h.b16 %v272
      %v512 = vunpack.c.l.b16 %v273
      %v513 = vunpack.c.h.b16 %v273
      %v514 = vunpack.c.l.b16 %v274
      %v515 = vunpack.c.h.b16 %v274
      %v516 = vunpack.c.l.b16 %v275
      %v517 = vunpack.c.h.b16 %v275
      %v518 = vunpack.c.l.b16 %v276
      %v519 = vunpack.c.h.b16 %v276
      %v520 = vunpack.c.l.b16 %v277
      %v521 = vunpack.c.h.b16 %v277
      %v522 = vunpack.c.l.b16 %v278
      %v523 = vunpack.c.h.b16 %v278
      %v524 = vunpack.c.l.b16 %v279
      %v525 = vunpack.c.h.b16 %v279
      %v526 = vunpack.c.l.b16 %v280
      %v527 = vunpack.c.h.b16 %v280
      %v528 = vunpack.c.l.b16 %v281
      %v529 = vunpack.c.h.b16 %v281
      %v530 = vunpack.c.l.b16 %v282
      %v531 = vunpack.c.h.b16 %v282
      %v532 = vunpack.c.l.b16 %v283
      %v533 = vunpack.c.h.b16 %v283
      %v534 = vunpack.c.l.b16 %v284
      %v535 = vunpack.c.h.b16 %v284
      %v536 = vunpack.c.l.b16 %v285
      %v537 = vunpack.c.h.b16 %v285
      %v538 = vunpack.c.l.b16 %v286
      %v539 = vunpack.c.h.b16 %v286
      %v540 = vunpack.c.l.b16 %v287
      %v541 = vunpack.c.h.b16 %v287
      %v542 = vunpack.c.l.b16 %v288
      %v543 = vunpack.c.h.b16 %v288
      %v544 = vunpack.c.l.b16 %v289
      %v545 = vunpack.c.h.b16 %v289
      %v546 = vunpack.c.l.b16 %v290
      %v547 = vunpack.c.h.b16 %v290
      %v548 = vunpack.c.l.b16 %v291
      %v549 = vunpack.c.h.b16 %v291
      %v550 = vunpack.c.l.b16 %v292
      %v551 = vunpack.c.h.b16 %v292
      %v552 = vunpack.c.l.b16 %v293
      %v553 = vunpack.c.h.b16 %v293
      %v554 = vunpack.c.l.b16 %v294
      %v555 = vunpack.c.h.b16 %v294
      %v556 = vunpack.c.l.b16 %v295
      %v557 = vunpack.c.h.b16 %v295
      %v558 = vunpack.c.l.b16 %v296
      %v559 = vunpack.c.h.b16 %v296
      %v560 = vunpack.c.l.b16 %v297
      %v561 = vunpack.c.h.b16 %v297
      %v562 = vunpack.c.l.b16 %v298
      %v563 = vunpack.c.h.b16 %v298
      %v564 = vunpack.c.l.b16 %v299
      %v565 = vunpack.c.h.b16 %v299
      %v566 = vunpack.c.l.b16 %v300
      %v567 = vunpack.c.h.b16 %v300
      %v568 = vunpack.c.l.b16 %v301
      %v569 = vunpack.c.h.b16 %v301
      %v570 = vunpack.c.l.b16 %v302
      %v571 = vunpack.c.h.b16 %v302
      %v572 = vunpack.c.l.b16 %v303
      %v573 = vunpack.c.h.b16 %v303
      %v574 = vunpack.c.l.b16 %v304
      %v575 = vunpack.c.h.b16 %v304
      %v576 = vunpack.c.l.b16 %v305
      %v577 = vunpack.c.h.b16 %v305
      %v578 = vpack.c.b16 %v454, %v450
      %v579 = vpack.c.b16 %v455, %v451
      %v580 = vpack.c.b16 %v456, %v452
      %v581 = vpack.c.b16 %v457, %v453
      %v582 = vpack.c.b16 %v462, %v458
      %v583 = vpack.c.b16 %v463, %v459
      %v584 = vpack.c.b16 %v464, %v460
      %v585 = vpack.c.b16 %v465, %v461
      %v586 = vpack.c.b16 %v470, %v466
      %v587 = vpack.c.b16 %v471, %v467
      %v588 = vpack.c.b16 %v472, %v468
      %v589 = vpack.c.b16 %v473, %v469
      %v590 = vpack.c.b16 %v478, %v474
      %v591 = vpack.c.b16 %v479, %v475
      %v592 = vpack.c.b16 %v480, %v476
      %v593 = vpack.c.b16 %v481, %v477
      %v594 = vpack.c.b16 %v486, %v482
      %v595 = vpack.c.b16 %v487, %v483
      %v596 = vpack.c.b16 %v488, %v484
      %v597 = vpack.c.b16 %v489, %v485
      %v598 = vpack.c.b16 %v494, %v490
      %v599 = vpack.c.b16 %v495, %v491
      %v600 = vpack.c.b16 %v496, %v492
      %v601 = vpack.c.b16 %v497, %v493
      %v602 = vpack.c.b16 %v502, %v498
      %v603 = vpack.c.b16 %v503, %v499
      %v604 = vpack.c.b16 %v504, %v500
      %v605 = vpack.c.b16 %v505, %v501
      %v606 = vpack.c.b16 %v510, %v506
      %v607 = vpack.c.b16 %v511, %v507
      %v608 = vpack.c.b16 %v512, %v508
      %v609 = vpack.c.b16 %v513, %v509
      %v610 = vpack.c.b16 %v518, %v514
      %v611 = vpack.c.b16 %v519, %v515
      %v612 = vpack.c.b16 %v520, %v516
      %v613 = vpack.c.b16 %v521, %v517
      %v614 = vpack.c.b16 %v526, %v522
      %v615 = vpack.c.b16 %v527, %v523
      %v616 = vpack.c.b16 %v528, %v524
      %v617 = vpack.c.b16 %v529, %v525
      %v618 = vpack.c.b16 %v534, %v530
      %v619 = vpack.c.b16 %v535, %v531
      %v620 = vpack.c.b16 %v536, %v532
      %v621 = vpack.c.b16 %v537, %v533
      %v622 = vpack.c.b16 %v542, %v538
      %v623 = vpack.c.b16 %v543, %v539
      %v624 = vpack.c.b16 %v544, %v540
      %v625 = vpack.c.b16 %v545, %v541
      %v626 = vpack.c.b16 %v550, %v546
      %v627 = vpack.c.b16 %v551, %v547
      %v628 = vpack.c.b16 %v552, %v548
      %v629 = vpack.c.b16 %v553, %v549
      %v630 = vpack.c.b16 %v558, %v554
      %v631 = vpack.c.b16 %v559, %v555
      %v632 = vpack.c.b16 %v560, %v556
      %v633 = vpack.c.b16 %v561, %v557
      %v634 = vpack.c.b16 %v566, %v562
      %v635 = vpack.c.b16 %v567, %v563
      %v636 = vpack.c.b16 %v568, %v564
      %v637 = vpack.c.b16 %v569, %v565
      %v638 = vpack.c.b16 %v574, %v570
      %v639 = vpack.c.b16 %v575, %v571
      %v640 = vpack.c.b16 %v576, %v572
      %v641 = vpack.c.b16 %v577, %v573
      %706 = vmatprep.subr.bf16.mxu0 %v579
      %707 = vmatpush1.bf16.msra.mxu0 %v578
      %708 = vmatprep.subr.bf16.mxu0 %v583
      %709 = vmatpush1.bf16.msra.mxu0 %v582
      %710 = vmatprep.subr.bf16.mxu0 %v587
      %711 = vmatpush1.bf16.msra.mxu0 %v586
      %712 = vmatprep.subr.bf16.mxu0 %v591
      %713 = vmatpush1.bf16.msra.mxu0 %v590
      %714 = vmatprep.subr.bf16.mxu0 %v595
      %715 = vmatpush1.bf16.msra.mxu0 %v594
      %716 = vmatprep.subr.bf16.mxu0 %v599
      %717 = vmatpush1.bf16.msra.mxu0 %v598
      %718 = vmatprep.subr.bf16.mxu0 %v603
      %719 = vmatpush1.bf16.msra.mxu0 %v602
      %720 = vmatprep.subr.bf16.mxu0 %v607
      %721 = vmatpush1.bf16.msra.mxu0 %v606
      %722 = vmatprep.subr.bf16.mxu0 %v611
      %723 = vmatpush1.bf16.msra.mxu0 %v610
      %724 = vmatprep.subr.bf16.mxu0 %v615
      %725 = vmatpush1.bf16.msra.mxu0 %v614
      %726 = vmatprep.subr.bf16.mxu0 %v619
      %727 = vmatpush1.bf16.msra.mxu0 %v618
      %728 = vmatprep.subr.bf16.mxu0 %v623
      %729 = vmatpush1.bf16.msra.mxu0 %v622
      %730 = vmatprep.subr.bf16.mxu0 %v627
      %731 = vmatpush1.bf16.msra.mxu0 %v626
      %732 = vmatprep.subr.bf16.mxu0 %v631
      %733 = vmatpush1.bf16.msra.mxu0 %v630
      %734 = vmatprep.subr.bf16.mxu0 %v635
      %735 = vmatpush1.bf16.msra.mxu0 %v634
      %736 = vmatprep.subr.bf16.mxu0 %v639
      %737 = vmatpush1.bf16.msra.mxu0 %v638
      %738 = vmatprep.mubr.bf16.mxu0 %v355
      %739 = vmatmul.mubr.bf16.gmra.mrb[0].mxu0 %v354
      %v740 = vpop.f32.mrb[0].mxu0
      %v741 = vadd.f32 0.0, %v740
      %v742 = vpop.f32.mrb[0].mxu0
      %v743 = vadd.f32 0.0, %v742
      %v744 = vpop.f32.mrb[0].mxu0
      %v745 = vadd.f32 0.0, %v744
      %v746 = vpop.f32.mrb[0].mxu0
      %v747 = vadd.f32 0.0, %v746
      %748 = vmatprep.mubr.bf16.mxu0 %v357
      %749 = vmatmul.mubr.bf16.gmra.mrb[0].mxu0 %v356
      %v750 = vpop.f32.mrb[0].mxu0
      %v751 = vadd.f32 0.0, %v750
      %v752 = vpop.f32.mrb[0].mxu0
      %v753 = vadd.f32 0.0, %v752
      %v754 = vpop.f32.mrb[0].mxu0
      %v755 = vadd.f32 0.0, %v754
      %v756 = vpop.f32.mrb[0].mxu0
      %v757 = vadd.f32 0.0, %v756
      %758 = vmatprep.mubr.bf16.mxu0 %v359
      %759 = vmatmul.mubr.bf16.gmra.mrb[0].mxu0 %v358
      %v760 = vpop.f32.mrb[0].mxu0
      %v761 = vadd.f32 0.0, %v760
      %v762 = vpop.f32.mrb[0].mxu0
      %v763 = vadd.f32 0.0, %v762
      %v764 = vpop.f32.mrb[0].mxu0
      %v765 = vadd.f32 0.0, %v764
      %v766 = vpop.f32.mrb[0].mxu0
      %v767 = vadd.f32 0.0, %v766
      %768 = vmatprep.mubr.bf16.mxu0 %v361
      %769 = vmatmul.mubr.bf16.gmra.mrb[0].mxu0 %v360
      %v770 = vpop.f32.mrb[0].mxu0
      %v771 = vadd.f32 0.0, %v770
      %v772 = vpop.f32.mrb[0].mxu0
      %v773 = vadd.f32 0.0, %v772
      %v774 = vpop.f32.mrb[0].mxu0
      %v775 = vadd.f32 0.0, %v774
      %v776 = vpop.f32.mrb[0].mxu0
      %v777 = vadd.f32 0.0, %v776
      %778 = vmatprep.mubr.bf16.mxu0 %v363
      %779 = vmatmul.mubr.bf16.gmra.mrb[0].mxu0 %v362
      %v780 = vpop.f32.mrb[0].mxu0
      %v781 = vadd.f32 0.0, %v780
      %v782 = vpop.f32.mrb[0].mxu0
      %v783 = vadd.f32 0.0, %v782
      %v784 = vpop.f32.mrb[0].mxu0
      %v785 = vadd.f32 0.0, %v784
      %v786 = vpop.f32.mrb[0].mxu0
      %v787 = vadd.f32 0.0, %v786
      %788 = vmatprep.mubr.bf16.mxu0 %v365
      %789 = vmatmul.mubr.bf16.gmra.mrb[0].mxu0 %v364
      %v790 = vpop.f32.mrb[0].mxu0
      %v791 = vadd.f32 0.0, %v790
      %v792 = vpop.f32.mrb[0].mxu0
      %v793 = vadd.f32 0.0, %v792
      %v794 = vpop.f32.mrb[0].mxu0
      %v795 = vadd.f32 0.0, %v794
      %v796 = vpop.f32.mrb[0].mxu0
      %v797 = vadd.f32 0.0, %v796
      %798 = vmatprep.mubr.bf16.mxu0 %v367
      %799 = vmatmul.mubr.bf16.gmra.mrb[0].mxu0 %v366
      %v800 = vpop.f32.mrb[0].mxu0
      %v801 = vadd.f32 0.0, %v800
      %v802 = vpop.f32.mrb[0].mxu0
      %v803 = vadd.f32 0.0, %v802
      %v804 = vpop.f32.mrb[0].mxu0
      %v805 = vadd.f32 0.0, %v804
      %v806 = vpop.f32.mrb[0].mxu0
      %v807 = vadd.f32 0.0, %v806
      %808 = vmatprep.mubr.bf16.mxu0 %v369
      %809 = vmatmul.mubr.bf16.gmra.mrb[0].mxu0 %v368
      %v810 = vpop.f32.mrb[0].mxu0
      %v811 = vadd.f32 0.0, %v810
      %v812 = vpop.f32.mrb[0].mxu0
      %v813 = vadd.f32 0.0, %v812
      %v814 = vpop.f32.mrb[0].mxu0
      %v815 = vadd.f32 0.0, %v814
      %v816 = vpop.f32.mrb[0].mxu0
      %v817 = vadd.f32 0.0, %v816
      %818 = vdwg.mxu0
      %819 = vmatprep.subr.bf16.mxu0 %v581
      %820 = vmatpush1.bf16.msra.mxu0 %v580
      %821 = vmatprep.subr.bf16.mxu0 %v585
      %822 = vmatpush1.bf16.msra.mxu0 %v584
      %823 = vmatprep.subr.bf16.mxu0 %v589
      %824 = vmatpush1.bf16.msra.mxu0 %v588
      %825 = vmatprep.subr.bf16.mxu0 %v593
      %826 = vmatpush1.bf16.msra.mxu0 %v592
      %827 = vmatprep.subr.bf16.mxu0 %v597
      %828 = vmatpush1.bf16.msra.mxu0 %v596
      %829 = vmatprep.subr.bf16.mxu0 %v601
      %830 = vmatpush1.bf16.msra.mxu0 %v600
      %831 = vmatprep.subr.bf16.mxu0 %v605
      %832 = vmatpush1.bf16.msra.mxu0 %v604
      %833 = vmatprep.subr.bf16.mxu0 %v609
      %834 = vmatpush1.bf16.msra.mxu0 %v608
      %835 = vmatprep.subr.bf16.mxu0 %v613
      %836 = vmatpush1.bf16.msra.mxu0 %v612
      %837 = vmatprep.subr.bf16.mxu0 %v617
      %838 = vmatpush1.bf16.msra.mxu0 %v616
      %839 = vmatprep.subr.bf16.mxu0 %v621
      %840 = vmatpush1.bf16.msra.mxu0 %v620
      %841 = vmatprep.subr.bf16.mxu0 %v625
      %842 = vmatpush1.bf16.msra.mxu0 %v624
      %843 = vmatprep.subr.bf16.mxu0 %v629
      %844 = vmatpush1.bf16.msra.mxu0 %v628
      %845 = vmatprep.subr.bf16.mxu0 %v633
      %846 = vmatpush1.bf16.msra.mxu0 %v632
      %847 = vmatprep.subr.bf16.mxu0 %v637
      %848 = vmatpush1.bf16.msra.mxu0 %v636
      %849 = vmatprep.subr.bf16.mxu0 %v641
      %850 = vmatpush1.bf16.msra.mxu0 %v640
      %851 = vmatprep.mubr.bf16.mxu0 %v355
      %852 = vmatmul.mubr.bf16.gmra.mrb[0].mxu0 %v354
      %v853 = vpop.f32.mrb[0].mxu0
      %v854 = vadd.f32 0.0, %v853
      %v855 = vpop.f32.mrb[0].mxu0
      %v856 = vadd.f32 0.0, %v855
      %v857 = vpop.f32.mrb[0].mxu0
      %v858 = vadd.f32 0.0, %v857
      %v859 = vpop.f32.mrb[0].mxu0
      %v860 = vadd.f32 0.0, %v859
      %861 = vmatprep.mubr.bf16.mxu0 %v357
      %862 = vmatmul.mubr.bf16.gmra.mrb[0].mxu0 %v356
      %v863 = vpop.f32.mrb[0].mxu0
      %v864 = vadd.f32 0.0, %v863
      %v865 = vpop.f32.mrb[0].mxu0
      %v866 = vadd.f32 0.0, %v865
      %v867 = vpop.f32.mrb[0].mxu0
      %v868 = vadd.f32 0.0, %v867
      %v869 = vpop.f32.mrb[0].mxu0
      %v870 = vadd.f32 0.0, %v869
      %871 = vmatprep.mubr.bf16.mxu0 %v359
      %872 = vmatmul.mubr.bf16.gmra.mrb[0].mxu0 %v358
      %v873 = vpop.f32.mrb[0].mxu0
      %v874 = vadd.f32 0.0, %v873
      %v875 = vpop.f32.mrb[0].mxu0
      %v876 = vadd.f32 0.0, %v875
      %v877 = vpop.f32.mrb[0].mxu0
      %v878 = vadd.f32 0.0, %v877
      %v879 = vpop.f32.mrb[0].mxu0
      %v880 = vadd.f32 0.0, %v879
      %881 = vmatprep.mubr.bf16.mxu0 %v361
      %882 = vmatmul.mubr.bf16.gmra.mrb[0].mxu0 %v360
      %v883 = vpop.f32.mrb[0].mxu0
      %v884 = vadd.f32 0.0, %v883
      %v885 = vpop.f32.mrb[0].mxu0
      %v886 = vadd.f32 0.0, %v885
      %v887 = vpop.f32.mrb[0].mxu0
      %v888 = vadd.f32 0.0, %v887
      %v889 = vpop.f32.mrb[0].mxu0
      %v890 = vadd.f32 0.0, %v889
      %891 = vmatprep.mubr.bf16.mxu0 %v363
      %892 = vmatmul.mubr.bf16.gmra.mrb[0].mxu0 %v362
      %v893 = vpop.f32.mrb[0].mxu0
      %v894 = vadd.f32 0.0, %v893
      %v895 = vpop.f32.mrb[0].mxu0
      %v896 = vadd.f32 0.0, %v895
      %v897 = vpop.f32.mrb[0].mxu0
      %v898 = vadd.f32 0.0, %v897
      %v899 = vpop.f32.mrb[0].mxu0
      %v900 = vadd.f32 0.0, %v899
      %901 = vmatprep.mubr.bf16.mxu0 %v365
      %902 = vmatmul.mubr.bf16.gmra.mrb[0].mxu0 %v364
      %v903 = vpop.f32.mrb[0].mxu0
      %v904 = vadd.f32 0.0, %v903
      %v905 = vpop.f32.mrb[0].mxu0
      %v906 = vadd.f32 0.0, %v905
      %v907 = vpop.f32.mrb[0].mxu0
      %v908 = vadd.f32 0.0, %v907
      %v909 = vpop.f32.mrb[0].mxu0
      %v910 = vadd.f32 0.0, %v909
      %911 = vmatprep.mubr.bf16.mxu0 %v367
      %912 = vmatmul.mubr.bf16.gmra.mrb[0].mxu0 %v366
      %v913 = vpop.f32.mrb[0].mxu0
      %v914 = vadd.f32 0.0, %v913
      %v915 = vpop.f32.mrb[0].mxu0
      %v916 = vadd.f32 0.0, %v915
      %v917 = vpop.f32.mrb[0].mxu0
      %v918 = vadd.f32 0.0, %v917
      %v919 = vpop.f32.mrb[0].mxu0
      %v920 = vadd.f32 0.0, %v919
      %921 = vmatprep.mubr.bf16.mxu0 %v369
      %922 = vmatmul.mubr.bf16.gmra.mrb[0].mxu0 %v368
      %v923 = vpop.f32.mrb[0].mxu0
      %v924 = vadd.f32 0.0, %v923
      %v925 = vpop.f32.mrb[0].mxu0
      %v926 = vadd.f32 0.0, %v925
      %v927 = vpop.f32.mrb[0].mxu0
      %v928 = vadd.f32 0.0, %v927
      %v929 = vpop.f32.mrb[0].mxu0
      %v930 = vadd.f32 0.0, %v929
      %931 = vdwg.mxu0
      %v932 = vmul.f32 %v741, %v741
      %v933 = vmul.f32 %v743, %v743
      %v934 = vmul.f32 %v745, %v745
      %v935 = vmul.f32 %v747, %v747
      %v936 = vmul.f32 %v751, %v751
      %v937 = vmul.f32 %v753, %v753
      %v938 = vmul.f32 %v755, %v755
      %v939 = vmul.f32 %v757, %v757
      %v940 = vmul.f32 %v761, %v761
      %v941 = vmul.f32 %v763, %v763
      %v942 = vmul.f32 %v765, %v765
      %v943 = vmul.f32 %v767, %v767
      %v944 = vmul.f32 %v771, %v771
      %v945 = vmul.f32 %v773, %v773
      %v946 = vmul.f32 %v775, %v775
      %v947 = vmul.f32 %v777, %v777
      %v948 = vmul.f32 %v781, %v781
      %v949 = vmul.f32 %v783, %v783
      %v950 = vmul.f32 %v785, %v785
      %v951 = vmul.f32 %v787, %v787
      %v952 = vmul.f32 %v791, %v791
      %v953 = vmul.f32 %v793, %v793
      %v954 = vmul.f32 %v795, %v795
      %v955 = vmul.f32 %v797, %v797
      %v956 = vmul.f32 %v801, %v801
      %v957 = vmul.f32 %v803, %v803
      %v958 = vmul.f32 %v805, %v805
      %v959 = vmul.f32 %v807, %v807
      %v960 = vmul.f32 %v811, %v811
      %v961 = vmul.f32 %v813, %v813
      %v962 = vmul.f32 %v815, %v815
      %v963 = vmul.f32 %v817, %v817
      %v964 = vmul.f32 %v854, %v854
      %v965 = vmul.f32 %v856, %v856
      %v966 = vmul.f32 %v858, %v858
      %v967 = vmul.f32 %v860, %v860
      %v968 = vmul.f32 %v864, %v864
      %v969 = vmul.f32 %v866, %v866
      %v970 = vmul.f32 %v868, %v868
      %v971 = vmul.f32 %v870, %v870
      %v972 = vmul.f32 %v874, %v874
      %v973 = vmul.f32 %v876, %v876
      %v974 = vmul.f32 %v878, %v878
      %v975 = vmul.f32 %v880, %v880
      %v976 = vmul.f32 %v884, %v884
      %v977 = vmul.f32 %v886, %v886
      %v978 = vmul.f32 %v888, %v888
      %v979 = vmul.f32 %v890, %v890
      %v980 = vmul.f32 %v894, %v894
      %v981 = vmul.f32 %v896, %v896
      %v982 = vmul.f32 %v898, %v898
      %v983 = vmul.f32 %v900, %v900
      %v984 = vmul.f32 %v904, %v904
      %v985 = vmul.f32 %v906, %v906
      %v986 = vmul.f32 %v908, %v908
      %v987 = vmul.f32 %v910, %v910
      %v988 = vmul.f32 %v914, %v914
      %v989 = vmul.f32 %v916, %v916
      %v990 = vmul.f32 %v918, %v918
      %v991 = vmul.f32 %v920, %v920
      %v992 = vmul.f32 %v924, %v924
      %v993 = vmul.f32 %v926, %v926
      %v994 = vmul.f32 %v928, %v928
      %v995 = vmul.f32 %v930, %v930
      %v996 = vadd.f32 %v932, %v964
      %v997 = vadd.f32 %v933, %v965
      %v998 = vadd.f32 %v934, %v966
      %v999 = vadd.f32 %v935, %v967
      %v1000 = vadd.f32 %v936, %v968
      %v1001 = vadd.f32 %v937, %v969
      %v1002 = vadd.f32 %v938, %v970
      %v1003 = vadd.f32 %v939, %v971
      %v1004 = vadd.f32 %v940, %v972
      %v1005 = vadd.f32 %v941, %v973
      %v1006 = vadd.f32 %v942, %v974
      %v1007 = vadd.f32 %v943, %v975
      %v1008 = vadd.f32 %v944, %v976
      %v1009 = vadd.f32 %v945, %v977
      %v1010 = vadd.f32 %v946, %v978
      %v1011 = vadd.f32 %v947, %v979
      %v1012 = vadd.f32 %v948, %v980
      %v1013 = vadd.f32 %v949, %v981
      %v1014 = vadd.f32 %v950, %v982
      %v1015 = vadd.f32 %v951, %v983
      %v1016 = vadd.f32 %v952, %v984
      %v1017 = vadd.f32 %v953, %v985
      %v1018 = vadd.f32 %v954, %v986
      %v1019 = vadd.f32 %v955, %v987
      %v1020 = vadd.f32 %v956, %v988
      %v1021 = vadd.f32 %v957, %v989
      %v1022 = vadd.f32 %v958, %v990
      %v1023 = vadd.f32 %v959, %v991
      %v1024 = vadd.f32 %v960, %v992
      %v1025 = vadd.f32 %v961, %v993
      %v1026 = vadd.f32 %v962, %v994
      %v1027 = vadd.f32 %v963, %v995
      %v1028 = vadd.f32 %v996, %v997
      %v1029 = vadd.f32 %v1028, %v998
      %v1030 = vadd.f32 %v1029, %v999
      %v1031 = vadd.f32 %v1030, %v1000
      %v1032 = vadd.f32 %v1031, %v1001
      %v1033 = vadd.f32 %v1032, %v1002
      %v1034 = vadd.f32 %v1033, %v1003
      %v1035 = vadd.f32 %v1034, %v1004
      %v1036 = vadd.f32 %v1035, %v1005
      %v1037 = vadd.f32 %v1036, %v1006
      %v1038 = vadd.f32 %v1037, %v1007
      %v1039 = vadd.f32 %v1038, %v1008
      %v1040 = vadd.f32 %v1039, %v1009
      %v1041 = vadd.f32 %v1040, %v1010
      %v1042 = vadd.f32 %v1041, %v1011
      %v1043 = vadd.f32 %v1042, %v1012
      %v1044 = vadd.f32 %v1043, %v1013
      %v1045 = vadd.f32 %v1044, %v1014
      %v1046 = vadd.f32 %v1045, %v1015
      %v1047 = vadd.f32 %v1046, %v1016
      %v1048 = vadd.f32 %v1047, %v1017
      %v1049 = vadd.f32 %v1048, %v1018
      %v1050 = vadd.f32 %v1049, %v1019
      %v1051 = vadd.f32 %v1050, %v1020
      %v1052 = vadd.f32 %v1051, %v1021
      %v1053 = vadd.f32 %v1052, %v1022
      %v1054 = vadd.f32 %v1053, %v1023
      %v1055 = vadd.f32 %v1054, %v1024
      %v1056 = vadd.f32 %v1055, %v1025
      %v1057 = vadd.f32 %v1056, %v1026
      %v1058 = vadd.f32 %v1057, %v1027
      %1059 = vadd.xlane.f32.xlu0 %v1058
      %v1060 = vpop.xlane.xlu0 %1059
      %v1061 = vrot.slane %v1060, 4
      %v1062 = vadd.f32 %v1060, %v1061
      %v1063 = vrot.slane %v1062, 2
      %v1064 = vadd.f32 %v1062, %v1063
      %v1065 = vrot.slane %v1064, 1
      %v1066 = vadd.f32 %v1064, %v1065
      %s1067 = vtos %v1066
      %v1068 = vmul.f32 %v996, %v996
      %v1069 = vmul.f32 %v997, %v997
      %v1070 = vmul.f32 %v998, %v998
      %v1071 = vmul.f32 %v999, %v999
      %v1072 = vmul.f32 %v1000, %v1000
      %v1073 = vmul.f32 %v1001, %v1001
      %v1074 = vmul.f32 %v1002, %v1002
      %v1075 = vmul.f32 %v1003, %v1003
      %v1076 = vmul.f32 %v1004, %v1004
      %v1077 = vmul.f32 %v1005, %v1005
      %v1078 = vmul.f32 %v1006, %v1006
      %v1079 = vmul.f32 %v1007, %v1007
      %v1080 = vmul.f32 %v1008, %v1008
      %v1081 = vmul.f32 %v1009, %v1009
      %v1082 = vmul.f32 %v1010, %v1010
      %v1083 = vmul.f32 %v1011, %v1011
      %v1084 = vmul.f32 %v1012, %v1012
      %v1085 = vmul.f32 %v1013, %v1013
      %v1086 = vmul.f32 %v1014, %v1014
      %v1087 = vmul.f32 %v1015, %v1015
      %v1088 = vmul.f32 %v1016, %v1016
      %v1089 = vmul.f32 %v1017, %v1017
      %v1090 = vmul.f32 %v1018, %v1018
      %v1091 = vmul.f32 %v1019, %v1019
      %v1092 = vmul.f32 %v1020, %v1020
      %v1093 = vmul.f32 %v1021, %v1021
      %v1094 = vmul.f32 %v1022, %v1022
      %v1095 = vmul.f32 %v1023, %v1023
      %v1096 = vmul.f32 %v1024, %v1024
      %v1097 = vmul.f32 %v1025, %v1025
      %v1098 = vmul.f32 %v1026, %v1026
      %v1099 = vmul.f32 %v1027, %v1027
      %v1100 = vadd.f32 %v1068, %v1069
      %v1101 = vadd.f32 %v1100, %v1070
      %v1102 = vadd.f32 %v1101, %v1071
      %v1103 = vadd.f32 %v1102, %v1072
      %v1104 = vadd.f32 %v1103, %v1073
      %v1105 = vadd.f32 %v1104, %v1074
      %v1106 = vadd.f32 %v1105, %v1075
      %v1107 = vadd.f32 %v1106, %v1076
      %v1108 = vadd.f32 %v1107, %v1077
      %v1109 = vadd.f32 %v1108, %v1078
      %v1110 = vadd.f32 %v1109, %v1079
      %v1111 = vadd.f32 %v1110, %v1080
      %v1112 = vadd.f32 %v1111, %v1081
      %v1113 = vadd.f32 %v1112, %v1082
      %v1114 = vadd.f32 %v1113, %v1083
      %v1115 = vadd.f32 %v1114, %v1084
      %v1116 = vadd.f32 %v1115, %v1085
      %v1117 = vadd.f32 %v1116, %v1086
      %v1118 = vadd.f32 %v1117, %v1087
      %v1119 = vadd.f32 %v1118, %v1088
      %v1120 = vadd.f32 %v1119, %v1089
      %v1121 = vadd.f32 %v1120, %v1090
      %v1122 = vadd.f32 %v1121, %v1091
      %v1123 = vadd.f32 %v1122, %v1092
      %v1124 = vadd.f32 %v1123, %v1093
      %v1125 = vadd.f32 %v1124, %v1094
      %v1126 = vadd.f32 %v1125, %v1095
      %v1127 = vadd.f32 %v1126, %v1096
      %v1128 = vadd.f32 %v1127, %v1097
      %v1129 = vadd.f32 %v1128, %v1098
      %v1130 = vadd.f32 %v1129, %v1099
      %1131 = vadd.xlane.f32.xlu0 %v1130
      %v1132 = vpop.xlane.xlu0 %1131
      %v1133 = vrot.slane %v1132, 4
      %v1134 = vadd.f32 %v1132, %v1133
      %v1135 = vrot.slane %v1134, 2
      %v1136 = vadd.f32 %v1134, %v1135
      %v1137 = vrot.slane %v1136, 1
      %v1138 = vadd.f32 %v1136, %v1137
      %s1139 = vtos %v1138
      %v1140 = vmax.f32 %v996, %v1000
      %v1141 = vmax.f32 %v997, %v1001
      %v1142 = vmax.f32 %v998, %v1002
      %v1143 = vmax.f32 %v999, %v1003
      %v1144 = vmax.f32 %v1140, %v1004
      %v1145 = vmax.f32 %v1141, %v1005
      %v1146 = vmax.f32 %v1142, %v1006
      %v1147 = vmax.f32 %v1143, %v1007
      %v1148 = vmax.f32 %v1144, %v1008
      %v1149 = vmax.f32 %v1145, %v1009
      %v1150 = vmax.f32 %v1146, %v1010
      %v1151 = vmax.f32 %v1147, %v1011
      %v1152 = vmax.f32 %v1148, %v1012
      %v1153 = vmax.f32 %v1149, %v1013
      %v1154 = vmax.f32 %v1150, %v1014
      %v1155 = vmax.f32 %v1151, %v1015
      %v1156 = vmax.f32 %v1152, %v1016
      %v1157 = vmax.f32 %v1153, %v1017
      %v1158 = vmax.f32 %v1154, %v1018
      %v1159 = vmax.f32 %v1155, %v1019
      %v1160 = vmax.f32 %v1156, %v1020
      %v1161 = vmax.f32 %v1157, %v1021
      %v1162 = vmax.f32 %v1158, %v1022
      %v1163 = vmax.f32 %v1159, %v1023
      %v1164 = vmax.f32 %v1160, %v1024
      %v1165 = vmax.f32 %v1161, %v1025
      %v1166 = vmax.f32 %v1162, %v1026
      %v1167 = vmax.f32 %v1163, %v1027
      %v1168 = vmax.f32 %v1164, %v1165
      %v1169 = vmax.f32 %v1166, %v1167
      %v1170 = vmax.f32 %v1168, %v1169
      %1171 = vmax.xlane.f32.xlu0 %v1170
      %v1172 = vpop.xlane.xlu0 %1171
      %v1173 = vrot.slane %v1172, 4
      %v1174 = vmax.f32 %v1172, %v1173
      %v1175 = vrot.slane %v1174, 2
      %v1176 = vmax.f32 %v1174, %v1175
      %v1177 = vrot.slane %v1176, 1
      %v1178 = vmax.f32 %v1176, %v1177
      %s1179 = vtos %v1178
      %v1180 = vlaneseq
      %v1181 = vshrl.u32 %v1180, 7
      %v1182 = vadd.s32 %v1181, 8
      %v1183 = vadd.s32 %v1181, 16
      %v1184 = vadd.s32 %v1181, 24
      %v1185 = vadd.s32 %v1181, 32
      %v1186 = vadd.s32 %v1181, 40
      %v1187 = vadd.s32 %v1181, 48
      %v1188 = vadd.s32 %v1181, 56
      %v1189 = vadd.s32 %v1181, 64
      %v1190 = vadd.s32 %v1181, 72
      %v1191 = vadd.s32 %v1181, 80
      %v1192 = vadd.s32 %v1181, 88
      %v1193 = vadd.s32 %v1181, 96
      %v1194 = vadd.s32 %v1181, 104
      %v1195 = vadd.s32 %v1181, 112
      %v1196 = vadd.s32 %v1181, 120
      %s1197 = smul.u32 %s20, 128
      %v1198 = vstv %s1197
      %v1199 = vadd.s32 %v1181, %v1198
      %v1200 = vadd.s32 %v1182, %v1198
      %v1201 = vadd.s32 %v1183, %v1198
      %v1202 = vadd.s32 %v1184, %v1198
      %v1203 = vadd.s32 %v1185, %v1198
      %v1204 = vadd.s32 %v1186, %v1198
      %v1205 = vadd.s32 %v1187, %v1198
      %v1206 = vadd.s32 %v1188, %v1198
      %v1207 = vadd.s32 %v1189, %v1198
      %v1208 = vadd.s32 %v1190, %v1198
      %v1209 = vadd.s32 %v1191, %v1198
      %v1210 = vadd.s32 %v1192, %v1198
      %v1211 = vadd.s32 %v1193, %v1198
      %v1212 = vadd.s32 %v1194, %v1198
      %v1213 = vadd.s32 %v1195, %v1198
      %v1214 = vadd.s32 %v1196, %v1198
      %v1215 = vlaneseq
      %v1216 = vand.u32 %v1215, 127
      %v1217 = vadd.s32 %v1216, 128
      %vm1218 = vcmp.lt.s32.totalorder %v1199, 17
      %vm1219 = vcmp.lt.s32.totalorder %v1200, 17
      %vm1220 = vcmp.lt.s32.totalorder %v1201, 17
      %vm1221 = vcmp.lt.s32.totalorder %v1202, 17
      %vm1222 = vcmp.lt.s32.totalorder %v1203, 17
      %vm1223 = vcmp.lt.s32.totalorder %v1204, 17
      %vm1224 = vcmp.lt.s32.totalorder %v1205, 17
      %vm1225 = vcmp.lt.s32.totalorder %v1206, 17
      %vm1226 = vcmp.lt.s32.totalorder %v1207, 17
      %vm1227 = vcmp.lt.s32.totalorder %v1208, 17
      %vm1228 = vcmp.lt.s32.totalorder %v1209, 17
      %vm1229 = vcmp.lt.s32.totalorder %v1210, 17
      %vm1230 = vcmp.lt.s32.totalorder %v1211, 17
      %vm1231 = vcmp.lt.s32.totalorder %v1212, 17
      %vm1232 = vcmp.lt.s32.totalorder %v1213, 17
      %vm1233 = vcmp.lt.s32.totalorder %v1214, 17
      %vm1234 = vcmp.lt.s32.totalorder %v1216, 129
      %vm1235 = vcmp.lt.s32.totalorder %v1217, 129
      %vm1236 = vmand %vm1218, %vm1234
      %vm1237 = vmand %vm1218, %vm1235
      %vm1238 = vmand %vm1219, %vm1234
      %vm1239 = vmand %vm1219, %vm1235
      %vm1240 = vmand %vm1220, %vm1234
      %vm1241 = vmand %vm1220, %vm1235
      %vm1242 = vmand %vm1221, %vm1234
      %vm1243 = vmand %vm1221, %vm1235
      %vm1244 = vmand %vm1222, %vm1234
      %vm1245 = vmand %vm1222, %vm1235
      %vm1246 = vmand %vm1223, %vm1234
      %vm1247 = vmand %vm1223, %vm1235
      %vm1248 = vmand %vm1224, %vm1234
      %vm1249 = vmand %vm1224, %vm1235
      %vm1250 = vmand %vm1225, %vm1234
      %vm1251 = vmand %vm1225, %vm1235
      %vm1252 = vmand %vm1226, %vm1234
      %vm1253 = vmand %vm1226, %vm1235
      %vm1254 = vmand %vm1227, %vm1234
      %vm1255 = vmand %vm1227, %vm1235
      %vm1256 = vmand %vm1228, %vm1234
      %vm1257 = vmand %vm1228, %vm1235
      %vm1258 = vmand %vm1229, %vm1234
      %vm1259 = vmand %vm1229, %vm1235
      %vm1260 = vmand %vm1230, %vm1234
      %vm1261 = vmand %vm1230, %vm1235
      %vm1262 = vmand %vm1231, %vm1234
      %vm1263 = vmand %vm1231, %vm1235
      %vm1264 = vmand %vm1232, %vm1234
      %vm1265 = vmand %vm1232, %vm1235
      %vm1266 = vmand %vm1233, %vm1234
      %vm1267 = vmand %vm1233, %vm1235
      %v1268 = vsel %vm1236, %v996, inf
      %v1269 = vsel %vm1237, %v997, inf
      %v1270 = vsel %vm1238, %v998, inf
      %v1271 = vsel %vm1239, %v999, inf
      %v1272 = vsel %vm1240, %v1000, inf
      %v1273 = vsel %vm1241, %v1001, inf
      %v1274 = vsel %vm1242, %v1002, inf
      %v1275 = vsel %vm1243, %v1003, inf
      %v1276 = vsel %vm1244, %v1004, inf
      %v1277 = vsel %vm1245, %v1005, inf
      %v1278 = vsel %vm1246, %v1006, inf
      %v1279 = vsel %vm1247, %v1007, inf
      %v1280 = vsel %vm1248, %v1008, inf
      %v1281 = vsel %vm1249, %v1009, inf
      %v1282 = vsel %vm1250, %v1010, inf
      %v1283 = vsel %vm1251, %v1011, inf
      %v1284 = vsel %vm1252, %v1012, inf
      %v1285 = vsel %vm1253, %v1013, inf
      %v1286 = vsel %vm1254, %v1014, inf
      %v1287 = vsel %vm1255, %v1015, inf
      %v1288 = vsel %vm1256, %v1016, inf
      %v1289 = vsel %vm1257, %v1017, inf
      %v1290 = vsel %vm1258, %v1018, inf
      %v1291 = vsel %vm1259, %v1019, inf
      %v1292 = vsel %vm1260, %v1020, inf
      %v1293 = vsel %vm1261, %v1021, inf
      %v1294 = vsel %vm1262, %v1022, inf
      %v1295 = vsel %vm1263, %v1023, inf
      %v1296 = vsel %vm1264, %v1024, inf
      %v1297 = vsel %vm1265, %v1025, inf
      %v1298 = vsel %vm1266, %v1026, inf
      %v1299 = vsel %vm1267, %v1027, inf
      %v1300 = vmin.f32 %v1268, %v1272
      %v1301 = vmin.f32 %v1269, %v1273
      %v1302 = vmin.f32 %v1270, %v1274
      %v1303 = vmin.f32 %v1271, %v1275
      %v1304 = vmin.f32 %v1300, %v1276
      %v1305 = vmin.f32 %v1301, %v1277
      %v1306 = vmin.f32 %v1302, %v1278
      %v1307 = vmin.f32 %v1303, %v1279
      %v1308 = vmin.f32 %v1304, %v1280
      %v1309 = vmin.f32 %v1305, %v1281
      %v1310 = vmin.f32 %v1306, %v1282
      %v1311 = vmin.f32 %v1307, %v1283
      %v1312 = vmin.f32 %v1308, %v1284
      %v1313 = vmin.f32 %v1309, %v1285
      %v1314 = vmin.f32 %v1310, %v1286
      %v1315 = vmin.f32 %v1311, %v1287
      %v1316 = vmin.f32 %v1312, %v1288
      %v1317 = vmin.f32 %v1313, %v1289
      %v1318 = vmin.f32 %v1314, %v1290
      %v1319 = vmin.f32 %v1315, %v1291
      %v1320 = vmin.f32 %v1316, %v1292
      %v1321 = vmin.f32 %v1317, %v1293
      %v1322 = vmin.f32 %v1318, %v1294
      %v1323 = vmin.f32 %v1319, %v1295
      %v1324 = vmin.f32 %v1320, %v1296
      %v1325 = vmin.f32 %v1321, %v1297
      %v1326 = vmin.f32 %v1322, %v1298
      %v1327 = vmin.f32 %v1323, %v1299
      %v1328 = vmin.f32 %v1324, %v1325
      %v1329 = vmin.f32 %v1326, %v1327
      %v1330 = vmin.f32 %v1328, %v1329
      %1331 = vmin.xlane.f32.xlu0 %v1330
      %v1332 = vpop.xlane.xlu0 %1331
      %v1333 = vrot.slane %v1332, 4
      %v1334 = vmin.f32 %v1332, %v1333
      %v1335 = vrot.slane %v1334, 2
      %v1336 = vmin.f32 %v1334, %v1335
      %v1337 = vrot.slane %v1336, 1
      %v1338 = vmin.f32 %v1336, %v1337
      %s1339 = vtos %v1338
      %1340 = vxpose.xlu0.b32.start [1/16] %v996, 128
      %1341 = vxpose.xlu0.b32.cont [2/16] %v998, 128
      %1342 = vxpose.xlu0.b32.cont [3/16] %v1000, 128
      %1343 = vxpose.xlu0.b32.cont [4/16] %v1002, 128
      %1344 = vxpose.xlu0.b32.cont [5/16] %v1004, 128
      %1345 = vxpose.xlu0.b32.cont [6/16] %v1006, 128
      %1346 = vxpose.xlu0.b32.cont [7/16] %v1008, 128
      %1347 = vxpose.xlu0.b32.cont [8/16] %v1010, 128
      %1348 = vxpose.xlu0.b32.cont [9/16] %v1012, 128
      %1349 = vxpose.xlu0.b32.cont [10/16] %v1014, 128
      %1350 = vxpose.xlu0.b32.cont [11/16] %v1016, 128
      %1351 = vxpose.xlu0.b32.cont [12/16] %v1018, 128
      %1352 = vxpose.xlu0.b32.cont [13/16] %v1020, 128
      %1353 = vxpose.xlu0.b32.cont [14/16] %v1022, 128
      %1354 = vxpose.xlu0.b32.cont [15/16] %v1024, 128
      %1355 = vxpose.xlu0.b32.end [16/16] %v1026, 128
      %v1356 = vpop.trf.xlu0
      %v1357 = vpop.trf.xlu0
      %v1358 = vpop.trf.xlu0
      %v1359 = vpop.trf.xlu0
      %v1360 = vpop.trf.xlu0
      %v1361 = vpop.trf.xlu0
      %v1362 = vpop.trf.xlu0
      %v1363 = vpop.trf.xlu0
      %v1364 = vpop.trf.xlu0
      %v1365 = vpop.trf.xlu0
      %v1366 = vpop.trf.xlu0
      %v1367 = vpop.trf.xlu0
      %v1368 = vpop.trf.xlu0
      %v1369 = vpop.trf.xlu0
      %v1370 = vpop.trf.xlu0
      %v1371 = vpop.trf.xlu0
      %1372 = vxpose.xlu0.b32.start [1/16] %v997, 128
      %1373 = vxpose.xlu0.b32.cont [2/16] %v999, 128
      %1374 = vxpose.xlu0.b32.cont [3/16] %v1001, 128
      %1375 = vxpose.xlu0.b32.cont [4/16] %v1003, 128
      %1376 = vxpose.xlu0.b32.cont [5/16] %v1005, 128
      %1377 = vxpose.xlu0.b32.cont [6/16] %v1007, 128
      %1378 = vxpose.xlu0.b32.cont [7/16] %v1009, 128
      %1379 = vxpose.xlu0.b32.cont [8/16] %v1011, 128
      %1380 = vxpose.xlu0.b32.cont [9/16] %v1013, 128
      %1381 = vxpose.xlu0.b32.cont [10/16] %v1015, 128
      %1382 = vxpose.xlu0.b32.cont [11/16] %v1017, 128
      %1383 = vxpose.xlu0.b32.cont [12/16] %v1019, 128
      %1384 = vxpose.xlu0.b32.cont [13/16] %v1021, 128
      %1385 = vxpose.xlu0.b32.cont [14/16] %v1023, 128
      %1386 = vxpose.xlu0.b32.cont [15/16] %v1025, 128
      %1387 = vxpose.xlu0.b32.end [16/16] %v1027, 128
      %v1388 = vpop.trf.xlu0
      %v1389 = vpop.trf.xlu0
      %v1390 = vpop.trf.xlu0
      %v1391 = vpop.trf.xlu0
      %v1392 = vpop.trf.xlu0
      %v1393 = vpop.trf.xlu0
      %v1394 = vpop.trf.xlu0
      %v1395 = vpop.trf.xlu0
      %v1396 = vpop.trf.xlu0
      %v1397 = vpop.trf.xlu0
      %v1398 = vpop.trf.xlu0
      %v1399 = vpop.trf.xlu0
      %v1400 = vpop.trf.xlu0
      %v1401 = vpop.trf.xlu0
      %v1402 = vpop.trf.xlu0
      %v1403 = vpop.trf.xlu0
      %1404 = vst [vmem:[%s219] sm:$0xff] %v1356
      %1405 = vst [vmem:[%s219 + $0x8] sm:$0xff] %v1357
      %1406 = vst [vmem:[%s219 + $0x10] sm:$0xff] %v1358
      %1407 = vst [vmem:[%s219 + $0x18] sm:$0xff] %v1359
      %1408 = vst [vmem:[%s219 + $0x20] sm:$0xff] %v1360
      %1409 = vst [vmem:[%s219 + $0x28] sm:$0xff] %v1361
      %1410 = vst [vmem:[%s219 + $0x30] sm:$0xff] %v1362
      %1411 = vst [vmem:[%s219 + $0x38] sm:$0xff] %v1363
      %1412 = vst [vmem:[%s219 + $0x40] sm:$0xff] %v1364
      %1413 = vst [vmem:[%s219 + $0x48] sm:$0xff] %v1365
      %1414 = vst [vmem:[%s219 + $0x50] sm:$0xff] %v1366
      %1415 = vst [vmem:[%s219 + $0x58] sm:$0xff] %v1367
      %1416 = vst [vmem:[%s219 + $0x60] sm:$0xff] %v1368
      %1417 = vst [vmem:[%s219 + $0x68] sm:$0xff] %v1369
      %1418 = vst [vmem:[%s219 + $0x70] sm:$0xff] %v1370
      %1419 = vst [vmem:[%s219 + $0x78] sm:$0xff] %v1371
      %1420 = vst [vmem:[%s219 + $0x80] sm:$0xff] %v1388
      %vm1421 = vcmp.eq.s32.totalorder %v1181, 0
      %vm1422 = vcmp.eq.s32.totalorder %v1181, 1
      %vm1423 = vcmp.eq.s32.totalorder %v1181, 2
      %vm1424 = vcmp.eq.s32.totalorder %v1181, 3
      %v1425 = vstv %s1179
      %v1426 = vsel %vm1424, %v1425, 0.0
      %v1427 = vstv %s1339
      %v1428 = vsel %vm1423, %v1427, %v1426
      %v1429 = vstv %s1139
      %v1430 = vsel %vm1422, %v1429, %v1428
      %v1431 = vstv %s1067
      %v1432 = vsel %vm1421, %v1431, %v1430
      %1433 = vst [vmem:[%s224] sm:$0xff] %v1432
      %p1434 = scmp.lt.s32.totalorder %s19, 5
      %s1435 = scalar_select %p1434, %s19, 5
      %p1436 = scmp.lt.s32.totalorder %s20, 0
      %s1437 = scalar_select %p1436, %s20, 0
      %s1438 = smul.addr %s1435, 17
      %s1439 = sadd.s32 %s1437, %s1438
      %s1440 = smul.addr %s1439, 8
      %s1441 = scalar_lea.vmem %s2, %s1440
      %s1442 = sadd.s32 %s19, %s20
      %p1443 = scmp.lt.s32.totalorder %s1442, 5
      %s1444 = scalar_select %p1443, %s1442, 5
      %s1445 = smul.addr %s1444, 8
      %s1446 = scalar_lea.vmem %s3, %s1445
      // Predicated region
      $region29: #{_forward_impl.1} parent=27 // pred_check
        %p1447 = pneg %p96
      $region30: #{_forward_impl.1} parent=27 // pred_check_branch
        %1449 = sbr.rel (%p1447) target = $region32
      $region31: #{_forward_impl.1} parent=27 // pred_region
        _
      $region32: #{_forward_impl.1} parent=27 // pred_fallthru
        _
      // Predicated region
      $region33: #{_forward_impl.1} parent=27 // pred_check
        %p1450 = pneg %p124
      $region34: #{_forward_impl.1} parent=27 // pred_check_branch
        %1452 = sbr.rel (%p1450) target = $region36
      $region35: #{_forward_impl.1} parent=27 // pred_region
        %s1453 = sadd.s32 %s19, %s20
      $region36: #{_forward_impl.1} parent=27 // pred_fallthru
        _
    $region28: #{_forward_impl.1} parent=5 // pred_fallthru
      _
    %p1454 = scmp.le.s32.totalorder 2, %s10
    // Predicated region
    $region37: #{_forward_impl.1} parent=5 // pred_check
      %p1455 = pneg %p1454
    $region38: #{_forward_impl.1} parent=5 // pred_check_branch
      %1457 = sbr.rel (%p1455) target = $region40
    $region39: #{_forward_impl.1} parent=5 // pred_region
      %s1458 = ssub.s32 %s10, 2
      // Predicated region
      $region41: #{_forward_impl.1} parent=39 // pred_check
        %p1459 = pneg %p102
      $region42: #{_forward_impl.1} parent=39 // pred_check_branch
        %1461 = sbr.rel (%p1459) target = $region44
      $region43: #{_forward_impl.1} parent=39 // pred_region
        %p1462 = scmp.lt.s32.totalorder %s21, 5
        %s1463 = scalar_select %p1462, %s21, 5
        %p1464 = scmp.lt.s32.totalorder %s22, 0
        %s1465 = scalar_select %p1464, %s22, 0
        %s1466 = smul.addr %s1463, 17
        %s1467 = sadd.s32 %s1465, %s1466
        %s1468 = smul.addr %s1467, 8
        %s1469 = scalar_lea.vmem %s2, %s1468
      $region44: #{_forward_impl.1} parent=39 // pred_fallthru
        _
      // Predicated region
      $region45: #{_forward_impl.1} parent=39 // pred_check
        %p1470 = pneg %p130
      $region46: #{_forward_impl.1} parent=39 // pred_check_branch
        %1472 = sbr.rel (%p1470) target = $region48
      $region47: #{_forward_impl.1} parent=39 // pred_region
        %s1473 = sadd.s32 %s21, %s22
        %p1474 = scmp.lt.s32.totalorder %s1473, 5
        %s1475 = scalar_select %p1474, %s1473, 5
        %s1476 = smul.addr %s1475, 8
        %s1477 = scalar_lea.vmem %s3, %s1476
      $region48: #{_forward_impl.1} parent=39 // pred_fallthru
        _
    $region40: #{_forward_impl.1} parent=5 // pred_fallthru
      _
  $region6: #{_forward_impl.1} parent=0 // loop_footer
    %s14 = sadd.s32 1, %s10
  $region7: #{_forward_impl.1} parent=0 // loop_footer_branch
    %9 = sbr.rel target = $region3
  $region8: #{_forward_impl.1} parent=0 // loop_exit
    _

</llo_original>
